<compile_context>
chip_gen: v6e
topology: v6e:2x2x1
jax: 0.10.0
libtpu: 0.0.40
codegen_flags: <defaults>
</compile_context>

<pallas_src>
import functools

import jax
import jax.numpy as jnp
import numpy as np
from jax import lax
from jax.experimental import pallas as pl
from jax.experimental.pallas import tpu as pltpu


def _brm_kernel(x_ref, wb1_ref, wb2_ref, out_ref, buf_ref, *, C, width, pad):
    # x_ref, out_ref: (Nb*C, HW)      row index = b*C + c   (b in batch block)
    # wb*_ref:        (Nb*C, 9*C + 1) row b*C+co = [W[co, ci, ky, kx]] ++ [bias[co]]
    # buf_ref:        (C, Nb*C, 2*pad + HW) f32 replicated line buffer:
    #                 buf[ci, b*C + co, pad:pad+HW] = input channel ci of batch b
    NbC, HW = out_ref.shape
    Nb = NbC // C
    W = width

    # Zero only the two halo strips; the interior is always fully overwritten.
    # (Done every grid step so it is correct under megacore scheduling.)
    buf_ref[:, :, 0:pad] = jnp.zeros((C, NbC, pad), jnp.float32)
    buf_ref[:, :, pad + HW:pad + HW + pad] = jnp.zeros((C, NbC, pad), jnp.float32)

    # In-kernel 0/1 column masks over the flattened spatial index p = h*W + w.
    col = lax.broadcasted_iota(jnp.int32, (1, HW), 1) % W
    mask_left = (col != 0).astype(jnp.float32)        # kills wrap for dx == -1
    mask_right = (col != W - 1).astype(jnp.float32)   # kills wrap for dx == +1

    def fill_interior(src):
        # buf[ci, b*C + co, :] <- src[b*C + ci, :]  replicated over co, so every
        # tap below is a single contiguous (Nb*C, HW) slice (full sublane use).
        for ci in range(C):
            for b in range(Nb):
                row = b * C + ci
                buf_ref[ci, b * C:(b + 1) * C, pad:pad + HW] = jnp.broadcast_to(
                    src[row:row + 1, :], (C, HW))

    def conv3x3(wb_ref):
        # 3x3 "same" conv on the VPU, vectorized over (batch*out_channel)
        # sublanes: 9*C broadcast-FMAs on (Nb*C, HW) per conv.
        bias = wb_ref[:, 9 * C:9 * C + 1]                  # (Nb*C, 1)
        acc_c = jnp.broadcast_to(bias, (NbC, HW))          # dx == 0 taps (+bias)
        acc_l = jnp.zeros((NbC, HW), jnp.float32)          # dx == -1 taps
        acc_r = jnp.zeros((NbC, HW), jnp.float32)          # dx == +1 taps
        for ci in range(C):
            for k in range(9):
                dy, dx = k // 3 - 1, k % 3 - 1
                off = pad + dy * W + dx
                tap = buf_ref[ci, :, off:off + HW]         # (Nb*C, HW) f32
                w = wb_ref[:, ci * 9 + k:ci * 9 + k + 1]   # (Nb*C, 1)
                if dx == -1:
                    acc_l = acc_l + w * tap
                elif dx == 1:
                    acc_r = acc_r + w * tap
                else:
                    acc_c = acc_c + w * tap
        # Boundary masking hoisted out of the tap loop: 2 multiplies per conv.
        return acc_c + mask_left * acc_l + mask_right * acc_r

    x_f32 = x_ref[...].astype(jnp.float32)                 # one coalesced load

    # conv1 + ReLU
    fill_interior(x_f32)
    r = jnp.maximum(conv3x3(wb1_ref), 0.0)

    # conv2 (reuse the same line buffer)
    fill_interior(r)
    r = conv3x3(wb2_ref)

    # residual add; single lane-dense store
    out_ref[...] = (x_f32 + r).astype(out_ref.dtype)


def _pick_nb(N, C):
    # Pack up to 8 // C batch elements per grid step (fills sublanes), but keep
    # at least 2 grid steps whenever N >= 2 so both v7x TensorCores stay busy.
    if N <= 1:
        return 1
    target = max(1, 8 // max(C, 1))
    for nb in range(min(target, N), 0, -1):
        if N % nb == 0 and N // nb >= 2:
            return nb
    return 1


@jax.jit
def boundary_refine(x_nchw, w1_oihw, b1, w2_oihw, b2):
    """Forward pass of _BoundaryRefineModule using PyTorch conventions
    (x: NCHW, conv weight: OIHW, bias: (C,)); output is NCHW."""
    N, C, H, W = x_nchw.shape
    assert w1_oihw.shape == (C, C, 3, 3) and w2_oihw.shape == (C, C, 3, 3)
    HW = H * W
    pad = ((W + 1 + 127) // 128) * 128       # lane-aligned halo, >= W + 1

    Nb = _pick_nb(N, C)
    G = N // Nb
    NbC = Nb * C

    # Pure reshape (row-major, no transpose): block g holds batches
    # [g*Nb, (g+1)*Nb) with row index b*C + c inside the block.
    x_blocks = x_nchw.reshape(G, NbC, HW)

    def pack(w, b):
        # (C, 9*C + 1): row co = [W[co, ci, ky, kx] for ci, ky, kx] ++ [bias[co]]
        wb = jnp.concatenate(
            [w.astype(jnp.float32).reshape(C, C * 9),
             b.astype(jnp.float32).reshape(C, 1)], axis=1)
        return jnp.tile(wb, (Nb, 1))         # (Nb*C, 9*C + 1)

    wb1 = pack(w1_oihw, b1)
    wb2 = pack(w2_oihw, b2)

    kernel = functools.partial(_brm_kernel, C=C, width=W, pad=pad)

    flops = 2 * 2 * 9 * C * C * HW * N                      # 2 convs, 2 flops/MAC
    bytes_accessed = (2 * N * C * HW + 2 * NbC * (9 * C + 1)) * 4

    out_blocks = pl.pallas_call(
        kernel,
        out_shape=jax.ShapeDtypeStruct((G, NbC, HW), x_nchw.dtype),
        grid=(G,),                                          # pipelined over batch blocks
        in_specs=[
            pl.BlockSpec((None, NbC, HW), lambda g: (g, 0, 0)),   # x block
            pl.BlockSpec((NbC, 9 * C + 1), lambda g: (0, 0)),     # w1+b1 (resident VMEM)
            pl.BlockSpec((NbC, 9 * C + 1), lambda g: (0, 0)),     # w2+b2 (resident VMEM)
        ],
        out_specs=pl.BlockSpec((None, NbC, HW), lambda g: (g, 0, 0)),
        scratch_shapes=[pltpu.VMEM((C, NbC, 2 * pad + HW), jnp.float32)],
        compiler_params=pltpu.CompilerParams(
            dimension_semantics=("parallel",),   # v7x: 2 TCs split the batch grid
            # Tiny footprint here (<1 MiB); 32 MiB is safe on all generations.
            # Raise this on v5e/v6e (128 MiB physical) if blocks grow.
            vmem_limit_bytes=32 * 1024 * 1024,
        ),
        cost_estimate=pl.CostEstimate(
            flops=flops, transcendentals=0, bytes_accessed=bytes_accessed),
    )(x_blocks, wb1, wb2)

    return out_blocks.reshape(N, C, H, W)


def _reference(x, w1, b1, w2, b2):
    # Pure-JAX reference (cross-correlation, matching torch.nn.Conv2d).
    dn = ("NCHW", "OIHW", "NCHW")
    r = lax.conv_general_dilated(x, w1, (1, 1), "SAME", dimension_numbers=dn,
                                 precision=lax.Precision.HIGHEST)
    r = r + b1[None, :, None, None]
    r = jnp.maximum(r, 0.0)
    r = lax.conv_general_dilated(r, w2, (1, 1), "SAME", dimension_numbers=dn,
                                 precision=lax.Precision.HIGHEST)
    r = r + b2[None, :, None, None]
    return x + r


if __name__ == "__main__":
    N, C, H, W = 2, 4, 16, 16          # x: (batch, dim, H, W)
    key = jax.random.PRNGKey(0)
    kx, k1, k2, kb1, kb2 = jax.random.split(key, 5)

    x = jax.random.normal(kx, (N, C, H, W), jnp.float32)
    # synthetic parameters for Conv2d(dim, dim, 3, padding=1) x 2
    w1 = jax.random.normal(k1, (C, C, 3, 3), jnp.float32) * 0.1
    b1 = jax.random.normal(kb1, (C,), jnp.float32) * 0.1
    w2 = jax.random.normal(k2, (C, C, 3, 3), jnp.float32) * 0.1
    b2 = jax.random.normal(kb2, (C,), jnp.float32) * 0.1

    out = jax.block_until_ready(boundary_refine(x, w1, b1, w2, b2))
    expected = jax.block_until_ready(_reference(x, w1, b1, w2, b2))

    assert out.shape == (N, C, H, W) and out.dtype == jnp.float32
    np.testing.assert_allclose(np.asarray(out), np.asarray(expected),
                               atol=1e-4, rtol=1e-4)
    print("KERNEL_OK")
</pallas_src>

<mosaic_0001>
module attributes {stable_mosaic.version = 11 : i64} {
  func.func @_brm_kernel(%arg0: i32, %arg1: memref<1x4x256xf32, #tpu.memory_space<vmem>>, %arg2: memref<4x37xf32, #tpu.memory_space<vmem>>, %arg3: memref<4x37xf32, #tpu.memory_space<vmem>>, %arg4: memref<1x4x256xf32, #tpu.memory_space<vmem>>, %arg5: memref<4x4x512xf32, #tpu.memory_space<vmem>>) attributes {dimension_semantics = [#tpu.dimension_semantics<parallel>], iteration_bounds = array<i64: 2>, scalar_prefetch = 0 : i64, scratch_operands = 1 : i64, tpu.core_type = #tpu.core_type<tc>, window_params = [{transform_indices = @transform_0, window_bounds = array<i64: 1, 4, 256>}, {pipeline_mode = #tpu.pipeline_mode<synchronous>, transform_indices = @transform_1, window_bounds = array<i64: 4, 37>}, {pipeline_mode = #tpu.pipeline_mode<synchronous>, transform_indices = @transform_2, window_bounds = array<i64: 4, 37>}, {transform_indices = @transform_3, window_bounds = array<i64: 1, 4, 256>}]} {
    %cst = arith.constant 0.000000e+00 : f32
    %0 = vector.broadcast %cst : f32 to vector<4x4x128xf32>
    %c0 = arith.constant 0 : index
    %c0_0 = arith.constant 0 : index
    %c0_1 = arith.constant 0 : index
    %1 = vector.load %arg5[%c0, %c0_0, %c0_1] : memref<4x4x512xf32, #tpu.memory_space<vmem>>, vector<4x4x128xf32>
    tpu.vector_store %arg5[%c0, %c0_0, %c0_1], %0 {strides = array<i32>} : memref<4x4x512xf32, #tpu.memory_space<vmem>>, vector<4x4x128xf32>,
    %cst_2 = arith.constant 0.000000e+00 : f32
    %2 = vector.broadcast %cst_2 : f32 to vector<4x4x128xf32>
    %c0_3 = arith.constant 0 : index
    %c0_4 = arith.constant 0 : index
    %c384 = arith.constant 384 : index
    %3 = vector.load %arg5[%c0_3, %c0_4, %c384] : memref<4x4x512xf32, #tpu.memory_space<vmem>>, vector<4x4x128xf32>
    tpu.vector_store %arg5[%c0_3, %c0_4, %c384], %2 {strides = array<i32>} : memref<4x4x512xf32, #tpu.memory_space<vmem>>, vector<4x4x128xf32>,
    %4 = tpu.iota {dimensions = array<i32: 1>} : vector<1x256xi32>
    %c16_i32 = arith.constant 16 : i32
    %c0_i32 = arith.constant 0 : i32
    %5 = arith.cmpi eq, %c16_i32, %c0_i32 : i32
    %c1_i32 = arith.constant 1 : i32
    %6 = arith.select %5, %c1_i32, %c16_i32 : i32
    %7 = vector.broadcast %6 : i32 to vector<1x256xi32>
    %8 = arith.remsi %4, %7 : vector<1x256xi32>
    %c0_i32_5 = arith.constant 0 : i32
    %9 = vector.broadcast %c0_i32_5 : i32 to vector<1x256xi32>
    %10 = arith.cmpi ne, %8, %9 : vector<1x256xi32>
    %c0_i32_6 = arith.constant 0 : i32
    %11 = vector.broadcast %c0_i32_6 : i32 to vector<1x256xi32>
    %12 = arith.cmpi slt, %8, %11 : vector<1x256xi32>
    %c0_i32_7 = arith.constant 0 : i32
    %13 = arith.cmpi slt, %6, %c0_i32_7 : i32
    %14 = vector.broadcast %13 : i1 to vector<1x256xi1>
    %15 = vector.broadcast %14 : vector<1x256xi1> to vector<1x256xi1>
    %16 = arith.xori %12, %15 : vector<1x256xi1>
    %17 = arith.andi %16, %10 : vector<1x256xi1>
    %18 = vector.broadcast %6 : i32 to vector<1x256xi32>
    %19 = arith.addi %8, %18 : vector<1x256xi32>
    %20 = arith.select %17, %19, %8 : vector<1x256xi1>, vector<1x256xi32>
    %c0_i32_8 = arith.constant 0 : i32
    %21 = vector.broadcast %c0_i32_8 : i32 to vector<1x256xi32>
    %22 = arith.cmpi ne, %20, %21 : vector<1x256xi32>
    %23 = arith.extui %22 : vector<1x256xi1> to vector<1x256xi32>
    %24 = arith.sitofp %23 : vector<1x256xi32> to vector<1x256xf32>
    %c15_i32 = arith.constant 15 : i32
    %25 = vector.broadcast %c15_i32 : i32 to vector<1x256xi32>
    %26 = arith.cmpi ne, %20, %25 : vector<1x256xi32>
    %27 = arith.extui %26 : vector<1x256xi1> to vector<1x256xi32>
    %28 = arith.sitofp %27 : vector<1x256xi32> to vector<1x256xf32>
    %c0_9 = arith.constant 0 : index
    %c0_10 = arith.constant 0 : index
    %c0_11 = arith.constant 0 : index
    %29 = vector.load %arg1[%c0_9, %c0_10, %c0_11] : memref<1x4x256xf32, #tpu.memory_space<vmem>>, vector<1x4x256xf32>
    %30 = vector.shape_cast %29 : vector<1x4x256xf32> to vector<4x256xf32>
    %31 = vector.extract_strided_slice %30 {offsets = [0, 0], sizes = [1, 256], strides = [1, 1]} : vector<4x256xf32> to vector<1x256xf32>
    %32 = vector.shape_cast %31 : vector<1x256xf32> to vector<1x256xf32>
    %33 = vector.broadcast %32 : vector<1x256xf32> to vector<4x256xf32>
    %c0_12 = arith.constant 0 : index
    %c0_13 = arith.constant 0 : index
    %c128 = arith.constant 128 : index
    %34 = vector.load %arg5[%c0_12, %c0_13, %c128] : memref<4x4x512xf32, #tpu.memory_space<vmem>>, vector<1x4x256xf32>
    %35 = vector.shape_cast %34 : vector<1x4x256xf32> to vector<4x256xf32>
    %36 = vector.shape_cast %33 : vector<4x256xf32> to vector<1x4x256xf32>
    tpu.vector_store %arg5[%c0_12, %c0_13, %c128], %36 {strides = array<i32>} : memref<4x4x512xf32, #tpu.memory_space<vmem>>, vector<1x4x256xf32>,
    %37 = vector.extract_strided_slice %30 {offsets = [1, 0], sizes = [1, 256], strides = [1, 1]} : vector<4x256xf32> to vector<1x256xf32>
    %38 = vector.shape_cast %37 : vector<1x256xf32> to vector<1x256xf32>
    %39 = vector.broadcast %38 : vector<1x256xf32> to vector<4x256xf32>
    %c1 = arith.constant 1 : index
    %c0_14 = arith.constant 0 : index
    %c128_15 = arith.constant 128 : index
    %40 = vector.load %arg5[%c1, %c0_14, %c128_15] : memref<4x4x512xf32, #tpu.memory_space<vmem>>, vector<1x4x256xf32>
    %41 = vector.shape_cast %40 : vector<1x4x256xf32> to vector<4x256xf32>
    %42 = vector.shape_cast %39 : vector<4x256xf32> to vector<1x4x256xf32>
    tpu.vector_store %arg5[%c1, %c0_14, %c128_15], %42 {strides = array<i32>} : memref<4x4x512xf32, #tpu.memory_space<vmem>>, vector<1x4x256xf32>,
    %43 = vector.extract_strided_slice %30 {offsets = [2, 0], sizes = [1, 256], strides = [1, 1]} : vector<4x256xf32> to vector<1x256xf32>
    %44 = vector.shape_cast %43 : vector<1x256xf32> to vector<1x256xf32>
    %45 = vector.broadcast %44 : vector<1x256xf32> to vector<4x256xf32>
    %c2 = arith.constant 2 : index
    %c0_16 = arith.constant 0 : index
    %c128_17 = arith.constant 128 : index
    %46 = vector.load %arg5[%c2, %c0_16, %c128_17] : memref<4x4x512xf32, #tpu.memory_space<vmem>>, vector<1x4x256xf32>
    %47 = vector.shape_cast %46 : vector<1x4x256xf32> to vector<4x256xf32>
    %48 = vector.shape_cast %45 : vector<4x256xf32> to vector<1x4x256xf32>
    tpu.vector_store %arg5[%c2, %c0_16, %c128_17], %48 {strides = array<i32>} : memref<4x4x512xf32, #tpu.memory_space<vmem>>, vector<1x4x256xf32>,
    %49 = vector.extract_strided_slice %30 {offsets = [3, 0], sizes = [1, 256], strides = [1, 1]} : vector<4x256xf32> to vector<1x256xf32>
    %50 = vector.shape_cast %49 : vector<1x256xf32> to vector<1x256xf32>
    %51 = vector.broadcast %50 : vector<1x256xf32> to vector<4x256xf32>
    %c3 = arith.constant 3 : index
    %c0_18 = arith.constant 0 : index
    %c128_19 = arith.constant 128 : index
    %52 = vector.load %arg5[%c3, %c0_18, %c128_19] : memref<4x4x512xf32, #tpu.memory_space<vmem>>, vector<1x4x256xf32>
    %53 = vector.shape_cast %52 : vector<1x4x256xf32> to vector<4x256xf32>
    %54 = vector.shape_cast %51 : vector<4x256xf32> to vector<1x4x256xf32>
    tpu.vector_store %arg5[%c3, %c0_18, %c128_19], %54 {strides = array<i32>} : memref<4x4x512xf32, #tpu.memory_space<vmem>>, vector<1x4x256xf32>,
    %c0_20 = arith.constant 0 : index
    %c36 = arith.constant 36 : index
    %55 = vector.load %arg2[%c0_20, %c36] : memref<4x37xf32, #tpu.memory_space<vmem>>, vector<4x1xf32>
    %56 = vector.shape_cast %55 : vector<4x1xf32> to vector<4x1xf32>
    %57 = vector.broadcast %56 : vector<4x1xf32> to vector<4x256xf32>
    %cst_21 = arith.constant 0.000000e+00 : f32
    %58 = vector.broadcast %cst_21 : f32 to vector<4x256xf32>
    %cst_22 = arith.constant 0.000000e+00 : f32
    %59 = vector.broadcast %cst_22 : f32 to vector<4x256xf32>
    %c0_23 = arith.constant 0 : index
    %c0_24 = arith.constant 0 : index
    %c111 = arith.constant 111 : index
    %60 = vector.load %arg5[%c0_23, %c0_24, %c111] : memref<4x4x512xf32, #tpu.memory_space<vmem>>, vector<1x4x256xf32>
    %61 = vector.shape_cast %60 : vector<1x4x256xf32> to vector<4x256xf32>
    %c0_25 = arith.constant 0 : index
    %c0_26 = arith.constant 0 : index
    %62 = vector.load %arg2[%c0_25, %c0_26] : memref<4x37xf32, #tpu.memory_space<vmem>>, vector<4x1xf32>
    %63 = vector.broadcast %62 : vector<4x1xf32> to vector<4x256xf32>
    %64 = arith.mulf %63, %61 : vector<4x256xf32>
    %65 = arith.addf %58, %64 : vector<4x256xf32>
    %c0_27 = arith.constant 0 : index
    %c0_28 = arith.constant 0 : index
    %c112 = arith.constant 112 : index
    %66 = vector.load %arg5[%c0_27, %c0_28, %c112] : memref<4x4x512xf32, #tpu.memory_space<vmem>>, vector<1x4x256xf32>
    %67 = vector.shape_cast %66 : vector<1x4x256xf32> to vector<4x256xf32>
    %c0_29 = arith.constant 0 : index
    %c1_30 = arith.constant 1 : index
    %68 = vector.load %arg2[%c0_29, %c1_30] : memref<4x37xf32, #tpu.memory_space<vmem>>, vector<4x1xf32>
    %69 = vector.broadcast %68 : vector<4x1xf32> to vector<4x256xf32>
    %70 = arith.mulf %69, %67 : vector<4x256xf32>
    %71 = arith.addf %57, %70 : vector<4x256xf32>
    %c0_31 = arith.constant 0 : index
    %c0_32 = arith.constant 0 : index
    %c113 = arith.constant 113 : index
    %72 = vector.load %arg5[%c0_31, %c0_32, %c113] : memref<4x4x512xf32, #tpu.memory_space<vmem>>, vector<1x4x256xf32>
    %73 = vector.shape_cast %72 : vector<1x4x256xf32> to vector<4x256xf32>
    %c0_33 = arith.constant 0 : index
    %c2_34 = arith.constant 2 : index
    %74 = vector.load %arg2[%c0_33, %c2_34] : memref<4x37xf32, #tpu.memory_space<vmem>>, vector<4x1xf32>
    %75 = vector.broadcast %74 : vector<4x1xf32> to vector<4x256xf32>
    %76 = arith.mulf %75, %73 : vector<4x256xf32>
    %77 = arith.addf %59, %76 : vector<4x256xf32>
    %c0_35 = arith.constant 0 : index
    %c0_36 = arith.constant 0 : index
    %c127 = arith.constant 127 : index
    %78 = vector.load %arg5[%c0_35, %c0_36, %c127] : memref<4x4x512xf32, #tpu.memory_space<vmem>>, vector<1x4x256xf32>
    %79 = vector.shape_cast %78 : vector<1x4x256xf32> to vector<4x256xf32>
    %c0_37 = arith.constant 0 : index
    %c3_38 = arith.constant 3 : index
    %80 = vector.load %arg2[%c0_37, %c3_38] : memref<4x37xf32, #tpu.memory_space<vmem>>, vector<4x1xf32>
    %81 = vector.broadcast %80 : vector<4x1xf32> to vector<4x256xf32>
    %82 = arith.mulf %81, %79 : vector<4x256xf32>
    %83 = arith.addf %65, %82 : vector<4x256xf32>
    %c0_39 = arith.constant 0 : index
    %c0_40 = arith.constant 0 : index
    %c128_41 = arith.constant 128 : index
    %84 = vector.load %arg5[%c0_39, %c0_40, %c128_41] : memref<4x4x512xf32, #tpu.memory_space<vmem>>, vector<1x4x256xf32>
    %85 = vector.shape_cast %84 : vector<1x4x256xf32> to vector<4x256xf32>
    %c0_42 = arith.constant 0 : index
    %c4 = arith.constant 4 : index
    %86 = vector.load %arg2[%c0_42, %c4] : memref<4x37xf32, #tpu.memory_space<vmem>>, vector<4x1xf32>
    %87 = vector.broadcast %86 : vector<4x1xf32> to vector<4x256xf32>
    %88 = arith.mulf %87, %85 : vector<4x256xf32>
    %89 = arith.addf %71, %88 : vector<4x256xf32>
    %c0_43 = arith.constant 0 : index
    %c0_44 = arith.constant 0 : index
    %c129 = arith.constant 129 : index
    %90 = vector.load %arg5[%c0_43, %c0_44, %c129] : memref<4x4x512xf32, #tpu.memory_space<vmem>>, vector<1x4x256xf32>
    %91 = vector.shape_cast %90 : vector<1x4x256xf32> to vector<4x256xf32>
    %c0_45 = arith.constant 0 : index
    %c5 = arith.constant 5 : index
    %92 = vector.load %arg2[%c0_45, %c5] : memref<4x37xf32, #tpu.memory_space<vmem>>, vector<4x1xf32>
    %93 = vector.broadcast %92 : vector<4x1xf32> to vector<4x256xf32>
    %94 = arith.mulf %93, %91 : vector<4x256xf32>
    %95 = arith.addf %77, %94 : vector<4x256xf32>
    %c0_46 = arith.constant 0 : index
    %c0_47 = arith.constant 0 : index
    %c143 = arith.constant 143 : index
    %96 = vector.load %arg5[%c0_46, %c0_47, %c143] : memref<4x4x512xf32, #tpu.memory_space<vmem>>, vector<1x4x256xf32>
    %97 = vector.shape_cast %96 : vector<1x4x256xf32> to vector<4x256xf32>
    %c0_48 = arith.constant 0 : index
    %c6 = arith.constant 6 : index
    %98 = vector.load %arg2[%c0_48, %c6] : memref<4x37xf32, #tpu.memory_space<vmem>>, vector<4x1xf32>
    %99 = vector.broadcast %98 : vector<4x1xf32> to vector<4x256xf32>
    %100 = arith.mulf %99, %97 : vector<4x256xf32>
    %101 = arith.addf %83, %100 : vector<4x256xf32>
    %c0_49 = arith.constant 0 : index
    %c0_50 = arith.constant 0 : index
    %c144 = arith.constant 144 : index
    %102 = vector.load %arg5[%c0_49, %c0_50, %c144] : memref<4x4x512xf32, #tpu.memory_space<vmem>>, vector<1x4x256xf32>
    %103 = vector.shape_cast %102 : vector<1x4x256xf32> to vector<4x256xf32>
    %c0_51 = arith.constant 0 : index
    %c7 = arith.constant 7 : index
    %104 = vector.load %arg2[%c0_51, %c7] : memref<4x37xf32, #tpu.memory_space<vmem>>, vector<4x1xf32>
    %105 = vector.broadcast %104 : vector<4x1xf32> to vector<4x256xf32>
    %106 = arith.mulf %105, %103 : vector<4x256xf32>
    %107 = arith.addf %89, %106 : vector<4x256xf32>
    %c0_52 = arith.constant 0 : index
    %c0_53 = arith.constant 0 : index
    %c145 = arith.constant 145 : index
    %108 = vector.load %arg5[%c0_52, %c0_53, %c145] : memref<4x4x512xf32, #tpu.memory_space<vmem>>, vector<1x4x256xf32>
    %109 = vector.shape_cast %108 : vector<1x4x256xf32> to vector<4x256xf32>
    %c0_54 = arith.constant 0 : index
    %c8 = arith.constant 8 : index
    %110 = vector.load %arg2[%c0_54, %c8] : memref<4x37xf32, #tpu.memory_space<vmem>>, vector<4x1xf32>
    %111 = vector.broadcast %110 : vector<4x1xf32> to vector<4x256xf32>
    %112 = arith.mulf %111, %109 : vector<4x256xf32>
    %113 = arith.addf %95, %112 : vector<4x256xf32>
    %c1_55 = arith.constant 1 : index
    %c0_56 = arith.constant 0 : index
    %c111_57 = arith.constant 111 : index
    %114 = vector.load %arg5[%c1_55, %c0_56, %c111_57] : memref<4x4x512xf32, #tpu.memory_space<vmem>>, vector<1x4x256xf32>
    %115 = vector.shape_cast %114 : vector<1x4x256xf32> to vector<4x256xf32>
    %c0_58 = arith.constant 0 : index
    %c9 = arith.constant 9 : index
    %116 = vector.load %arg2[%c0_58, %c9] : memref<4x37xf32, #tpu.memory_space<vmem>>, vector<4x1xf32>
    %117 = vector.broadcast %116 : vector<4x1xf32> to vector<4x256xf32>
    %118 = arith.mulf %117, %115 : vector<4x256xf32>
    %119 = arith.addf %101, %118 : vector<4x256xf32>
    %c1_59 = arith.constant 1 : index
    %c0_60 = arith.constant 0 : index
    %c112_61 = arith.constant 112 : index
    %120 = vector.load %arg5[%c1_59, %c0_60, %c112_61] : memref<4x4x512xf32, #tpu.memory_space<vmem>>, vector<1x4x256xf32>
    %121 = vector.shape_cast %120 : vector<1x4x256xf32> to vector<4x256xf32>
    %c0_62 = arith.constant 0 : index
    %c10 = arith.constant 10 : index
    %122 = vector.load %arg2[%c0_62, %c10] : memref<4x37xf32, #tpu.memory_space<vmem>>, vector<4x1xf32>
    %123 = vector.broadcast %122 : vector<4x1xf32> to vector<4x256xf32>
    %124 = arith.mulf %123, %121 : vector<4x256xf32>
    %125 = arith.addf %107, %124 : vector<4x256xf32>
    %c1_63 = arith.constant 1 : index
    %c0_64 = arith.constant 0 : index
    %c113_65 = arith.constant 113 : index
    %126 = vector.load %arg5[%c1_63, %c0_64, %c113_65] : memref<4x4x512xf32, #tpu.memory_space<vmem>>, vector<1x4x256xf32>
    %127 = vector.shape_cast %126 : vector<1x4x256xf32> to vector<4x256xf32>
    %c0_66 = arith.constant 0 : index
    %c11 = arith.constant 11 : index
    %128 = vector.load %arg2[%c0_66, %c11] : memref<4x37xf32, #tpu.memory_space<vmem>>, vector<4x1xf32>
    %129 = vector.broadcast %128 : vector<4x1xf32> to vector<4x256xf32>
    %130 = arith.mulf %129, %127 : vector<4x256xf32>
    %131 = arith.addf %113, %130 : vector<4x256xf32>
    %c1_67 = arith.constant 1 : index
    %c0_68 = arith.constant 0 : index
    %c127_69 = arith.constant 127 : index
    %132 = vector.load %arg5[%c1_67, %c0_68, %c127_69] : memref<4x4x512xf32, #tpu.memory_space<vmem>>, vector<1x4x256xf32>
    %133 = vector.shape_cast %132 : vector<1x4x256xf32> to vector<4x256xf32>
    %c0_70 = arith.constant 0 : index
    %c12 = arith.constant 12 : index
    %134 = vector.load %arg2[%c0_70, %c12] : memref<4x37xf32, #tpu.memory_space<vmem>>, vector<4x1xf32>
    %135 = vector.broadcast %134 : vector<4x1xf32> to vector<4x256xf32>
    %136 = arith.mulf %135, %133 : vector<4x256xf32>
    %137 = arith.addf %119, %136 : vector<4x256xf32>
    %c1_71 = arith.constant 1 : index
    %c0_72 = arith.constant 0 : index
    %c128_73 = arith.constant 128 : index
    %138 = vector.load %arg5[%c1_71, %c0_72, %c128_73] : memref<4x4x512xf32, #tpu.memory_space<vmem>>, vector<1x4x256xf32>
    %139 = vector.shape_cast %138 : vector<1x4x256xf32> to vector<4x256xf32>
    %c0_74 = arith.constant 0 : index
    %c13 = arith.constant 13 : index
    %140 = vector.load %arg2[%c0_74, %c13] : memref<4x37xf32, #tpu.memory_space<vmem>>, vector<4x1xf32>
    %141 = vector.broadcast %140 : vector<4x1xf32> to vector<4x256xf32>
    %142 = arith.mulf %141, %139 : vector<4x256xf32>
    %143 = arith.addf %125, %142 : vector<4x256xf32>
    %c1_75 = arith.constant 1 : index
    %c0_76 = arith.constant 0 : index
    %c129_77 = arith.constant 129 : index
    %144 = vector.load %arg5[%c1_75, %c0_76, %c129_77] : memref<4x4x512xf32, #tpu.memory_space<vmem>>, vector<1x4x256xf32>
    %145 = vector.shape_cast %144 : vector<1x4x256xf32> to vector<4x256xf32>
    %c0_78 = arith.constant 0 : index
    %c14 = arith.constant 14 : index
    %146 = vector.load %arg2[%c0_78, %c14] : memref<4x37xf32, #tpu.memory_space<vmem>>, vector<4x1xf32>
    %147 = vector.broadcast %146 : vector<4x1xf32> to vector<4x256xf32>
    %148 = arith.mulf %147, %145 : vector<4x256xf32>
    %149 = arith.addf %131, %148 : vector<4x256xf32>
    %c1_79 = arith.constant 1 : index
    %c0_80 = arith.constant 0 : index
    %c143_81 = arith.constant 143 : index
    %150 = vector.load %arg5[%c1_79, %c0_80, %c143_81] : memref<4x4x512xf32, #tpu.memory_space<vmem>>, vector<1x4x256xf32>
    %151 = vector.shape_cast %150 : vector<1x4x256xf32> to vector<4x256xf32>
    %c0_82 = arith.constant 0 : index
    %c15 = arith.constant 15 : index
    %152 = vector.load %arg2[%c0_82, %c15] : memref<4x37xf32, #tpu.memory_space<vmem>>, vector<4x1xf32>
    %153 = vector.broadcast %152 : vector<4x1xf32> to vector<4x256xf32>
    %154 = arith.mulf %153, %151 : vector<4x256xf32>
    %155 = arith.addf %137, %154 : vector<4x256xf32>
    %c1_83 = arith.constant 1 : index
    %c0_84 = arith.constant 0 : index
    %c144_85 = arith.constant 144 : index
    %156 = vector.load %arg5[%c1_83, %c0_84, %c144_85] : memref<4x4x512xf32, #tpu.memory_space<vmem>>, vector<1x4x256xf32>
    %157 = vector.shape_cast %156 : vector<1x4x256xf32> to vector<4x256xf32>
    %c0_86 = arith.constant 0 : index
    %c16 = arith.constant 16 : index
    %158 = vector.load %arg2[%c0_86, %c16] : memref<4x37xf32, #tpu.memory_space<vmem>>, vector<4x1xf32>
    %159 = vector.broadcast %158 : vector<4x1xf32> to vector<4x256xf32>
    %160 = arith.mulf %159, %157 : vector<4x256xf32>
    %161 = arith.addf %143, %160 : vector<4x256xf32>
    %c1_87 = arith.constant 1 : index
    %c0_88 = arith.constant 0 : index
    %c145_89 = arith.constant 145 : index
    %162 = vector.load %arg5[%c1_87, %c0_88, %c145_89] : memref<4x4x512xf32, #tpu.memory_space<vmem>>, vector<1x4x256xf32>
    %163 = vector.shape_cast %162 : vector<1x4x256xf32> to vector<4x256xf32>
    %c0_90 = arith.constant 0 : index
    %c17 = arith.constant 17 : index
    %164 = vector.load %arg2[%c0_90, %c17] : memref<4x37xf32, #tpu.memory_space<vmem>>, vector<4x1xf32>
    %165 = vector.broadcast %164 : vector<4x1xf32> to vector<4x256xf32>
    %166 = arith.mulf %165, %163 : vector<4x256xf32>
    %167 = arith.addf %149, %166 : vector<4x256xf32>
    %c2_91 = arith.constant 2 : index
    %c0_92 = arith.constant 0 : index
    %c111_93 = arith.constant 111 : index
    %168 = vector.load %arg5[%c2_91, %c0_92, %c111_93] : memref<4x4x512xf32, #tpu.memory_space<vmem>>, vector<1x4x256xf32>
    %169 = vector.shape_cast %168 : vector<1x4x256xf32> to vector<4x256xf32>
    %c0_94 = arith.constant 0 : index
    %c18 = arith.constant 18 : index
    %170 = vector.load %arg2[%c0_94, %c18] : memref<4x37xf32, #tpu.memory_space<vmem>>, vector<4x1xf32>
    %171 = vector.broadcast %170 : vector<4x1xf32> to vector<4x256xf32>
    %172 = arith.mulf %171, %169 : vector<4x256xf32>
    %173 = arith.addf %155, %172 : vector<4x256xf32>
    %c2_95 = arith.constant 2 : index
    %c0_96 = arith.constant 0 : index
    %c112_97 = arith.constant 112 : index
    %174 = vector.load %arg5[%c2_95, %c0_96, %c112_97] : memref<4x4x512xf32, #tpu.memory_space<vmem>>, vector<1x4x256xf32>
    %175 = vector.shape_cast %174 : vector<1x4x256xf32> to vector<4x256xf32>
    %c0_98 = arith.constant 0 : index
    %c19 = arith.constant 19 : index
    %176 = vector.load %arg2[%c0_98, %c19] : memref<4x37xf32, #tpu.memory_space<vmem>>, vector<4x1xf32>
    %177 = vector.broadcast %176 : vector<4x1xf32> to vector<4x256xf32>
    %178 = arith.mulf %177, %175 : vector<4x256xf32>
    %179 = arith.addf %161, %178 : vector<4x256xf32>
    %c2_99 = arith.constant 2 : index
    %c0_100 = arith.constant 0 : index
    %c113_101 = arith.constant 113 : index
    %180 = vector.load %arg5[%c2_99, %c0_100, %c113_101] : memref<4x4x512xf32, #tpu.memory_space<vmem>>, vector<1x4x256xf32>
    %181 = vector.shape_cast %180 : vector<1x4x256xf32> to vector<4x256xf32>
    %c0_102 = arith.constant 0 : index
    %c20 = arith.constant 20 : index
    %182 = vector.load %arg2[%c0_102, %c20] : memref<4x37xf32, #tpu.memory_space<vmem>>, vector<4x1xf32>
    %183 = vector.broadcast %182 : vector<4x1xf32> to vector<4x256xf32>
    %184 = arith.mulf %183, %181 : vector<4x256xf32>
    %185 = arith.addf %167, %184 : vector<4x256xf32>
    %c2_103 = arith.constant 2 : index
    %c0_104 = arith.constant 0 : index
    %c127_105 = arith.constant 127 : index
    %186 = vector.load %arg5[%c2_103, %c0_104, %c127_105] : memref<4x4x512xf32, #tpu.memory_space<vmem>>, vector<1x4x256xf32>
    %187 = vector.shape_cast %186 : vector<1x4x256xf32> to vector<4x256xf32>
    %c0_106 = arith.constant 0 : index
    %c21 = arith.constant 21 : index
    %188 = vector.load %arg2[%c0_106, %c21] : memref<4x37xf32, #tpu.memory_space<vmem>>, vector<4x1xf32>
    %189 = vector.broadcast %188 : vector<4x1xf32> to vector<4x256xf32>
    %190 = arith.mulf %189, %187 : vector<4x256xf32>
    %191 = arith.addf %173, %190 : vector<4x256xf32>
    %c2_107 = arith.constant 2 : index
    %c0_108 = arith.constant 0 : index
    %c128_109 = arith.constant 128 : index
    %192 = vector.load %arg5[%c2_107, %c0_108, %c128_109] : memref<4x4x512xf32, #tpu.memory_space<vmem>>, vector<1x4x256xf32>
    %193 = vector.shape_cast %192 : vector<1x4x256xf32> to vector<4x256xf32>
    %c0_110 = arith.constant 0 : index
    %c22 = arith.constant 22 : index
    %194 = vector.load %arg2[%c0_110, %c22] : memref<4x37xf32, #tpu.memory_space<vmem>>, vector<4x1xf32>
    %195 = vector.broadcast %194 : vector<4x1xf32> to vector<4x256xf32>
    %196 = arith.mulf %195, %193 : vector<4x256xf32>
    %197 = arith.addf %179, %196 : vector<4x256xf32>
    %c2_111 = arith.constant 2 : index
    %c0_112 = arith.constant 0 : index
    %c129_113 = arith.constant 129 : index
    %198 = vector.load %arg5[%c2_111, %c0_112, %c129_113] : memref<4x4x512xf32, #tpu.memory_space<vmem>>, vector<1x4x256xf32>
    %199 = vector.shape_cast %198 : vector<1x4x256xf32> to vector<4x256xf32>
    %c0_114 = arith.constant 0 : index
    %c23 = arith.constant 23 : index
    %200 = vector.load %arg2[%c0_114, %c23] : memref<4x37xf32, #tpu.memory_space<vmem>>, vector<4x1xf32>
    %201 = vector.broadcast %200 : vector<4x1xf32> to vector<4x256xf32>
    %202 = arith.mulf %201, %199 : vector<4x256xf32>
    %203 = arith.addf %185, %202 : vector<4x256xf32>
    %c2_115 = arith.constant 2 : index
    %c0_116 = arith.constant 0 : index
    %c143_117 = arith.constant 143 : index
    %204 = vector.load %arg5[%c2_115, %c0_116, %c143_117] : memref<4x4x512xf32, #tpu.memory_space<vmem>>, vector<1x4x256xf32>
    %205 = vector.shape_cast %204 : vector<1x4x256xf32> to vector<4x256xf32>
    %c0_118 = arith.constant 0 : index
    %c24 = arith.constant 24 : index
    %206 = vector.load %arg2[%c0_118, %c24] : memref<4x37xf32, #tpu.memory_space<vmem>>, vector<4x1xf32>
    %207 = vector.broadcast %206 : vector<4x1xf32> to vector<4x256xf32>
    %208 = arith.mulf %207, %205 : vector<4x256xf32>
    %209 = arith.addf %191, %208 : vector<4x256xf32>
    %c2_119 = arith.constant 2 : index
    %c0_120 = arith.constant 0 : index
    %c144_121 = arith.constant 144 : index
    %210 = vector.load %arg5[%c2_119, %c0_120, %c144_121] : memref<4x4x512xf32, #tpu.memory_space<vmem>>, vector<1x4x256xf32>
    %211 = vector.shape_cast %210 : vector<1x4x256xf32> to vector<4x256xf32>
    %c0_122 = arith.constant 0 : index
    %c25 = arith.constant 25 : index
    %212 = vector.load %arg2[%c0_122, %c25] : memref<4x37xf32, #tpu.memory_space<vmem>>, vector<4x1xf32>
    %213 = vector.broadcast %212 : vector<4x1xf32> to vector<4x256xf32>
    %214 = arith.mulf %213, %211 : vector<4x256xf32>
    %215 = arith.addf %197, %214 : vector<4x256xf32>
    %c2_123 = arith.constant 2 : index
    %c0_124 = arith.constant 0 : index
    %c145_125 = arith.constant 145 : index
    %216 = vector.load %arg5[%c2_123, %c0_124, %c145_125] : memref<4x4x512xf32, #tpu.memory_space<vmem>>, vector<1x4x256xf32>
    %217 = vector.shape_cast %216 : vector<1x4x256xf32> to vector<4x256xf32>
    %c0_126 = arith.constant 0 : index
    %c26 = arith.constant 26 : index
    %218 = vector.load %arg2[%c0_126, %c26] : memref<4x37xf32, #tpu.memory_space<vmem>>, vector<4x1xf32>
    %219 = vector.broadcast %218 : vector<4x1xf32> to vector<4x256xf32>
    %220 = arith.mulf %219, %217 : vector<4x256xf32>
    %221 = arith.addf %203, %220 : vector<4x256xf32>
    %c3_127 = arith.constant 3 : index
    %c0_128 = arith.constant 0 : index
    %c111_129 = arith.constant 111 : index
    %222 = vector.load %arg5[%c3_127, %c0_128, %c111_129] : memref<4x4x512xf32, #tpu.memory_space<vmem>>, vector<1x4x256xf32>
    %223 = vector.shape_cast %222 : vector<1x4x256xf32> to vector<4x256xf32>
    %c0_130 = arith.constant 0 : index
    %c27 = arith.constant 27 : index
    %224 = vector.load %arg2[%c0_130, %c27] : memref<4x37xf32, #tpu.memory_space<vmem>>, vector<4x1xf32>
    %225 = vector.broadcast %224 : vector<4x1xf32> to vector<4x256xf32>
    %226 = arith.mulf %225, %223 : vector<4x256xf32>
    %227 = arith.addf %209, %226 : vector<4x256xf32>
    %c3_131 = arith.constant 3 : index
    %c0_132 = arith.constant 0 : index
    %c112_133 = arith.constant 112 : index
    %228 = vector.load %arg5[%c3_131, %c0_132, %c112_133] : memref<4x4x512xf32, #tpu.memory_space<vmem>>, vector<1x4x256xf32>
    %229 = vector.shape_cast %228 : vector<1x4x256xf32> to vector<4x256xf32>
    %c0_134 = arith.constant 0 : index
    %c28 = arith.constant 28 : index
    %230 = vector.load %arg2[%c0_134, %c28] : memref<4x37xf32, #tpu.memory_space<vmem>>, vector<4x1xf32>
    %231 = vector.broadcast %230 : vector<4x1xf32> to vector<4x256xf32>
    %232 = arith.mulf %231, %229 : vector<4x256xf32>
    %233 = arith.addf %215, %232 : vector<4x256xf32>
    %c3_135 = arith.constant 3 : index
    %c0_136 = arith.constant 0 : index
    %c113_137 = arith.constant 113 : index
    %234 = vector.load %arg5[%c3_135, %c0_136, %c113_137] : memref<4x4x512xf32, #tpu.memory_space<vmem>>, vector<1x4x256xf32>
    %235 = vector.shape_cast %234 : vector<1x4x256xf32> to vector<4x256xf32>
    %c0_138 = arith.constant 0 : index
    %c29 = arith.constant 29 : index
    %236 = vector.load %arg2[%c0_138, %c29] : memref<4x37xf32, #tpu.memory_space<vmem>>, vector<4x1xf32>
    %237 = vector.broadcast %236 : vector<4x1xf32> to vector<4x256xf32>
    %238 = arith.mulf %237, %235 : vector<4x256xf32>
    %239 = arith.addf %221, %238 : vector<4x256xf32>
    %c3_139 = arith.constant 3 : index
    %c0_140 = arith.constant 0 : index
    %c127_141 = arith.constant 127 : index
    %240 = vector.load %arg5[%c3_139, %c0_140, %c127_141] : memref<4x4x512xf32, #tpu.memory_space<vmem>>, vector<1x4x256xf32>
    %241 = vector.shape_cast %240 : vector<1x4x256xf32> to vector<4x256xf32>
    %c0_142 = arith.constant 0 : index
    %c30 = arith.constant 30 : index
    %242 = vector.load %arg2[%c0_142, %c30] : memref<4x37xf32, #tpu.memory_space<vmem>>, vector<4x1xf32>
    %243 = vector.broadcast %242 : vector<4x1xf32> to vector<4x256xf32>
    %244 = arith.mulf %243, %241 : vector<4x256xf32>
    %245 = arith.addf %227, %244 : vector<4x256xf32>
    %c3_143 = arith.constant 3 : index
    %c0_144 = arith.constant 0 : index
    %c128_145 = arith.constant 128 : index
    %246 = vector.load %arg5[%c3_143, %c0_144, %c128_145] : memref<4x4x512xf32, #tpu.memory_space<vmem>>, vector<1x4x256xf32>
    %247 = vector.shape_cast %246 : vector<1x4x256xf32> to vector<4x256xf32>
    %c0_146 = arith.constant 0 : index
    %c31 = arith.constant 31 : index
    %248 = vector.load %arg2[%c0_146, %c31] : memref<4x37xf32, #tpu.memory_space<vmem>>, vector<4x1xf32>
    %249 = vector.broadcast %248 : vector<4x1xf32> to vector<4x256xf32>
    %250 = arith.mulf %249, %247 : vector<4x256xf32>
    %251 = arith.addf %233, %250 : vector<4x256xf32>
    %c3_147 = arith.constant 3 : index
    %c0_148 = arith.constant 0 : index
    %c129_149 = arith.constant 129 : index
    %252 = vector.load %arg5[%c3_147, %c0_148, %c129_149] : memref<4x4x512xf32, #tpu.memory_space<vmem>>, vector<1x4x256xf32>
    %253 = vector.shape_cast %252 : vector<1x4x256xf32> to vector<4x256xf32>
    %c0_150 = arith.constant 0 : index
    %c32 = arith.constant 32 : index
    %254 = vector.load %arg2[%c0_150, %c32] : memref<4x37xf32, #tpu.memory_space<vmem>>, vector<4x1xf32>
    %255 = vector.broadcast %254 : vector<4x1xf32> to vector<4x256xf32>
    %256 = arith.mulf %255, %253 : vector<4x256xf32>
    %257 = arith.addf %239, %256 : vector<4x256xf32>
    %c3_151 = arith.constant 3 : index
    %c0_152 = arith.constant 0 : index
    %c143_153 = arith.constant 143 : index
    %258 = vector.load %arg5[%c3_151, %c0_152, %c143_153] : memref<4x4x512xf32, #tpu.memory_space<vmem>>, vector<1x4x256xf32>
    %259 = vector.shape_cast %258 : vector<1x4x256xf32> to vector<4x256xf32>
    %c0_154 = arith.constant 0 : index
    %c33 = arith.constant 33 : index
    %260 = vector.load %arg2[%c0_154, %c33] : memref<4x37xf32, #tpu.memory_space<vmem>>, vector<4x1xf32>
    %261 = vector.broadcast %260 : vector<4x1xf32> to vector<4x256xf32>
    %262 = arith.mulf %261, %259 : vector<4x256xf32>
    %263 = arith.addf %245, %262 : vector<4x256xf32>
    %c3_155 = arith.constant 3 : index
    %c0_156 = arith.constant 0 : index
    %c144_157 = arith.constant 144 : index
    %264 = vector.load %arg5[%c3_155, %c0_156, %c144_157] : memref<4x4x512xf32, #tpu.memory_space<vmem>>, vector<1x4x256xf32>
    %265 = vector.shape_cast %264 : vector<1x4x256xf32> to vector<4x256xf32>
    %c0_158 = arith.constant 0 : index
    %c34 = arith.constant 34 : index
    %266 = vector.load %arg2[%c0_158, %c34] : memref<4x37xf32, #tpu.memory_space<vmem>>, vector<4x1xf32>
    %267 = vector.broadcast %266 : vector<4x1xf32> to vector<4x256xf32>
    %268 = arith.mulf %267, %265 : vector<4x256xf32>
    %269 = arith.addf %251, %268 : vector<4x256xf32>
    %c3_159 = arith.constant 3 : index
    %c0_160 = arith.constant 0 : index
    %c145_161 = arith.constant 145 : index
    %270 = vector.load %arg5[%c3_159, %c0_160, %c145_161] : memref<4x4x512xf32, #tpu.memory_space<vmem>>, vector<1x4x256xf32>
    %271 = vector.shape_cast %270 : vector<1x4x256xf32> to vector<4x256xf32>
    %c0_162 = arith.constant 0 : index
    %c35 = arith.constant 35 : index
    %272 = vector.load %arg2[%c0_162, %c35] : memref<4x37xf32, #tpu.memory_space<vmem>>, vector<4x1xf32>
    %273 = vector.broadcast %272 : vector<4x1xf32> to vector<4x256xf32>
    %274 = arith.mulf %273, %271 : vector<4x256xf32>
    %275 = arith.addf %257, %274 : vector<4x256xf32>
    %276 = vector.broadcast %24 : vector<1x256xf32> to vector<4x256xf32>
    %277 = arith.mulf %276, %263 : vector<4x256xf32>
    %278 = arith.addf %269, %277 : vector<4x256xf32>
    %279 = vector.broadcast %28 : vector<1x256xf32> to vector<4x256xf32>
    %280 = arith.mulf %279, %275 : vector<4x256xf32>
    %281 = arith.addf %278, %280 : vector<4x256xf32>
    %cst_163 = arith.constant 0.000000e+00 : f32
    %282 = vector.broadcast %cst_163 : f32 to vector<4x256xf32>
    %283 = arith.maximumf %281, %282 : vector<4x256xf32>
    %284 = vector.extract_strided_slice %283 {offsets = [0, 0], sizes = [1, 256], strides = [1, 1]} : vector<4x256xf32> to vector<1x256xf32>
    %285 = vector.shape_cast %284 : vector<1x256xf32> to vector<1x256xf32>
    %286 = vector.broadcast %285 : vector<1x256xf32> to vector<4x256xf32>
    %c0_164 = arith.constant 0 : index
    %c0_165 = arith.constant 0 : index
    %c128_166 = arith.constant 128 : index
    %287 = vector.load %arg5[%c0_164, %c0_165, %c128_166] : memref<4x4x512xf32, #tpu.memory_space<vmem>>, vector<1x4x256xf32>
    %288 = vector.shape_cast %287 : vector<1x4x256xf32> to vector<4x256xf32>
    %289 = vector.shape_cast %286 : vector<4x256xf32> to vector<1x4x256xf32>
    tpu.vector_store %arg5[%c0_164, %c0_165, %c128_166], %289 {strides = array<i32>} : memref<4x4x512xf32, #tpu.memory_space<vmem>>, vector<1x4x256xf32>,
    %290 = vector.extract_strided_slice %283 {offsets = [1, 0], sizes = [1, 256], strides = [1, 1]} : vector<4x256xf32> to vector<1x256xf32>
    %291 = vector.shape_cast %290 : vector<1x256xf32> to vector<1x256xf32>
    %292 = vector.broadcast %291 : vector<1x256xf32> to vector<4x256xf32>
    %c1_167 = arith.constant 1 : index
    %c0_168 = arith.constant 0 : index
    %c128_169 = arith.constant 128 : index
    %293 = vector.load %arg5[%c1_167, %c0_168, %c128_169] : memref<4x4x512xf32, #tpu.memory_space<vmem>>, vector<1x4x256xf32>
    %294 = vector.shape_cast %293 : vector<1x4x256xf32> to vector<4x256xf32>
    %295 = vector.shape_cast %292 : vector<4x256xf32> to vector<1x4x256xf32>
    tpu.vector_store %arg5[%c1_167, %c0_168, %c128_169], %295 {strides = array<i32>} : memref<4x4x512xf32, #tpu.memory_space<vmem>>, vector<1x4x256xf32>,
    %296 = vector.extract_strided_slice %283 {offsets = [2, 0], sizes = [1, 256], strides = [1, 1]} : vector<4x256xf32> to vector<1x256xf32>
    %297 = vector.shape_cast %296 : vector<1x256xf32> to vector<1x256xf32>
    %298 = vector.broadcast %297 : vector<1x256xf32> to vector<4x256xf32>
    %c2_170 = arith.constant 2 : index
    %c0_171 = arith.constant 0 : index
    %c128_172 = arith.constant 128 : index
    %299 = vector.load %arg5[%c2_170, %c0_171, %c128_172] : memref<4x4x512xf32, #tpu.memory_space<vmem>>, vector<1x4x256xf32>
    %300 = vector.shape_cast %299 : vector<1x4x256xf32> to vector<4x256xf32>
    %301 = vector.shape_cast %298 : vector<4x256xf32> to vector<1x4x256xf32>
    tpu.vector_store %arg5[%c2_170, %c0_171, %c128_172], %301 {strides = array<i32>} : memref<4x4x512xf32, #tpu.memory_space<vmem>>, vector<1x4x256xf32>,
    %302 = vector.extract_strided_slice %283 {offsets = [3, 0], sizes = [1, 256], strides = [1, 1]} : vector<4x256xf32> to vector<1x256xf32>
    %303 = vector.shape_cast %302 : vector<1x256xf32> to vector<1x256xf32>
    %304 = vector.broadcast %303 : vector<1x256xf32> to vector<4x256xf32>
    %c3_173 = arith.constant 3 : index
    %c0_174 = arith.constant 0 : index
    %c128_175 = arith.constant 128 : index
    %305 = vector.load %arg5[%c3_173, %c0_174, %c128_175] : memref<4x4x512xf32, #tpu.memory_space<vmem>>, vector<1x4x256xf32>
    %306 = vector.shape_cast %305 : vector<1x4x256xf32> to vector<4x256xf32>
    %307 = vector.shape_cast %304 : vector<4x256xf32> to vector<1x4x256xf32>
    tpu.vector_store %arg5[%c3_173, %c0_174, %c128_175], %307 {strides = array<i32>} : memref<4x4x512xf32, #tpu.memory_space<vmem>>, vector<1x4x256xf32>,
    %c0_176 = arith.constant 0 : index
    %c36_177 = arith.constant 36 : index
    %308 = vector.load %arg3[%c0_176, %c36_177] : memref<4x37xf32, #tpu.memory_space<vmem>>, vector<4x1xf32>
    %309 = vector.shape_cast %308 : vector<4x1xf32> to vector<4x1xf32>
    %310 = vector.broadcast %309 : vector<4x1xf32> to vector<4x256xf32>
    %cst_178 = arith.constant 0.000000e+00 : f32
    %311 = vector.broadcast %cst_178 : f32 to vector<4x256xf32>
    %cst_179 = arith.constant 0.000000e+00 : f32
    %312 = vector.broadcast %cst_179 : f32 to vector<4x256xf32>
    %c0_180 = arith.constant 0 : index
    %c0_181 = arith.constant 0 : index
    %c111_182 = arith.constant 111 : index
    %313 = vector.load %arg5[%c0_180, %c0_181, %c111_182] : memref<4x4x512xf32, #tpu.memory_space<vmem>>, vector<1x4x256xf32>
    %314 = vector.shape_cast %313 : vector<1x4x256xf32> to vector<4x256xf32>
    %c0_183 = arith.constant 0 : index
    %c0_184 = arith.constant 0 : index
    %315 = vector.load %arg3[%c0_183, %c0_184] : memref<4x37xf32, #tpu.memory_space<vmem>>, vector<4x1xf32>
    %316 = vector.broadcast %315 : vector<4x1xf32> to vector<4x256xf32>
    %317 = arith.mulf %316, %314 : vector<4x256xf32>
    %318 = arith.addf %311, %317 : vector<4x256xf32>
    %c0_185 = arith.constant 0 : index
    %c0_186 = arith.constant 0 : index
    %c112_187 = arith.constant 112 : index
    %319 = vector.load %arg5[%c0_185, %c0_186, %c112_187] : memref<4x4x512xf32, #tpu.memory_space<vmem>>, vector<1x4x256xf32>
    %320 = vector.shape_cast %319 : vector<1x4x256xf32> to vector<4x256xf32>
    %c0_188 = arith.constant 0 : index
    %c1_189 = arith.constant 1 : index
    %321 = vector.load %arg3[%c0_188, %c1_189] : memref<4x37xf32, #tpu.memory_space<vmem>>, vector<4x1xf32>
    %322 = vector.broadcast %321 : vector<4x1xf32> to vector<4x256xf32>
    %323 = arith.mulf %322, %320 : vector<4x256xf32>
    %324 = arith.addf %310, %323 : vector<4x256xf32>
    %c0_190 = arith.constant 0 : index
    %c0_191 = arith.constant 0 : index
    %c113_192 = arith.constant 113 : index
    %325 = vector.load %arg5[%c0_190, %c0_191, %c113_192] : memref<4x4x512xf32, #tpu.memory_space<vmem>>, vector<1x4x256xf32>
    %326 = vector.shape_cast %325 : vector<1x4x256xf32> to vector<4x256xf32>
    %c0_193 = arith.constant 0 : index
    %c2_194 = arith.constant 2 : index
    %327 = vector.load %arg3[%c0_193, %c2_194] : memref<4x37xf32, #tpu.memory_space<vmem>>, vector<4x1xf32>
    %328 = vector.broadcast %327 : vector<4x1xf32> to vector<4x256xf32>
    %329 = arith.mulf %328, %326 : vector<4x256xf32>
    %330 = arith.addf %312, %329 : vector<4x256xf32>
    %c0_195 = arith.constant 0 : index
    %c0_196 = arith.constant 0 : index
    %c127_197 = arith.constant 127 : index
    %331 = vector.load %arg5[%c0_195, %c0_196, %c127_197] : memref<4x4x512xf32, #tpu.memory_space<vmem>>, vector<1x4x256xf32>
    %332 = vector.shape_cast %331 : vector<1x4x256xf32> to vector<4x256xf32>
    %c0_198 = arith.constant 0 : index
    %c3_199 = arith.constant 3 : index
    %333 = vector.load %arg3[%c0_198, %c3_199] : memref<4x37xf32, #tpu.memory_space<vmem>>, vector<4x1xf32>
    %334 = vector.broadcast %333 : vector<4x1xf32> to vector<4x256xf32>
    %335 = arith.mulf %334, %332 : vector<4x256xf32>
    %336 = arith.addf %318, %335 : vector<4x256xf32>
    %c0_200 = arith.constant 0 : index
    %c0_201 = arith.constant 0 : index
    %c128_202 = arith.constant 128 : index
    %337 = vector.load %arg5[%c0_200, %c0_201, %c128_202] : memref<4x4x512xf32, #tpu.memory_space<vmem>>, vector<1x4x256xf32>
    %338 = vector.shape_cast %337 : vector<1x4x256xf32> to vector<4x256xf32>
    %c0_203 = arith.constant 0 : index
    %c4_204 = arith.constant 4 : index
    %339 = vector.load %arg3[%c0_203, %c4_204] : memref<4x37xf32, #tpu.memory_space<vmem>>, vector<4x1xf32>
    %340 = vector.broadcast %339 : vector<4x1xf32> to vector<4x256xf32>
    %341 = arith.mulf %340, %338 : vector<4x256xf32>
    %342 = arith.addf %324, %341 : vector<4x256xf32>
    %c0_205 = arith.constant 0 : index
    %c0_206 = arith.constant 0 : index
    %c129_207 = arith.constant 129 : index
    %343 = vector.load %arg5[%c0_205, %c0_206, %c129_207] : memref<4x4x512xf32, #tpu.memory_space<vmem>>, vector<1x4x256xf32>
    %344 = vector.shape_cast %343 : vector<1x4x256xf32> to vector<4x256xf32>
    %c0_208 = arith.constant 0 : index
    %c5_209 = arith.constant 5 : index
    %345 = vector.load %arg3[%c0_208, %c5_209] : memref<4x37xf32, #tpu.memory_space<vmem>>, vector<4x1xf32>
    %346 = vector.broadcast %345 : vector<4x1xf32> to vector<4x256xf32>
    %347 = arith.mulf %346, %344 : vector<4x256xf32>
    %348 = arith.addf %330, %347 : vector<4x256xf32>
    %c0_210 = arith.constant 0 : index
    %c0_211 = arith.constant 0 : index
    %c143_212 = arith.constant 143 : index
    %349 = vector.load %arg5[%c0_210, %c0_211, %c143_212] : memref<4x4x512xf32, #tpu.memory_space<vmem>>, vector<1x4x256xf32>
    %350 = vector.shape_cast %349 : vector<1x4x256xf32> to vector<4x256xf32>
    %c0_213 = arith.constant 0 : index
    %c6_214 = arith.constant 6 : index
    %351 = vector.load %arg3[%c0_213, %c6_214] : memref<4x37xf32, #tpu.memory_space<vmem>>, vector<4x1xf32>
    %352 = vector.broadcast %351 : vector<4x1xf32> to vector<4x256xf32>
    %353 = arith.mulf %352, %350 : vector<4x256xf32>
    %354 = arith.addf %336, %353 : vector<4x256xf32>
    %c0_215 = arith.constant 0 : index
    %c0_216 = arith.constant 0 : index
    %c144_217 = arith.constant 144 : index
    %355 = vector.load %arg5[%c0_215, %c0_216, %c144_217] : memref<4x4x512xf32, #tpu.memory_space<vmem>>, vector<1x4x256xf32>
    %356 = vector.shape_cast %355 : vector<1x4x256xf32> to vector<4x256xf32>
    %c0_218 = arith.constant 0 : index
    %c7_219 = arith.constant 7 : index
    %357 = vector.load %arg3[%c0_218, %c7_219] : memref<4x37xf32, #tpu.memory_space<vmem>>, vector<4x1xf32>
    %358 = vector.broadcast %357 : vector<4x1xf32> to vector<4x256xf32>
    %359 = arith.mulf %358, %356 : vector<4x256xf32>
    %360 = arith.addf %342, %359 : vector<4x256xf32>
    %c0_220 = arith.constant 0 : index
    %c0_221 = arith.constant 0 : index
    %c145_222 = arith.constant 145 : index
    %361 = vector.load %arg5[%c0_220, %c0_221, %c145_222] : memref<4x4x512xf32, #tpu.memory_space<vmem>>, vector<1x4x256xf32>
    %362 = vector.shape_cast %361 : vector<1x4x256xf32> to vector<4x256xf32>
    %c0_223 = arith.constant 0 : index
    %c8_224 = arith.constant 8 : index
    %363 = vector.load %arg3[%c0_223, %c8_224] : memref<4x37xf32, #tpu.memory_space<vmem>>, vector<4x1xf32>
    %364 = vector.broadcast %363 : vector<4x1xf32> to vector<4x256xf32>
    %365 = arith.mulf %364, %362 : vector<4x256xf32>
    %366 = arith.addf %348, %365 : vector<4x256xf32>
    %c1_225 = arith.constant 1 : index
    %c0_226 = arith.constant 0 : index
    %c111_227 = arith.constant 111 : index
    %367 = vector.load %arg5[%c1_225, %c0_226, %c111_227] : memref<4x4x512xf32, #tpu.memory_space<vmem>>, vector<1x4x256xf32>
    %368 = vector.shape_cast %367 : vector<1x4x256xf32> to vector<4x256xf32>
    %c0_228 = arith.constant 0 : index
    %c9_229 = arith.constant 9 : index
    %369 = vector.load %arg3[%c0_228, %c9_229] : memref<4x37xf32, #tpu.memory_space<vmem>>, vector<4x1xf32>
    %370 = vector.broadcast %369 : vector<4x1xf32> to vector<4x256xf32>
    %371 = arith.mulf %370, %368 : vector<4x256xf32>
    %372 = arith.addf %354, %371 : vector<4x256xf32>
    %c1_230 = arith.constant 1 : index
    %c0_231 = arith.constant 0 : index
    %c112_232 = arith.constant 112 : index
    %373 = vector.load %arg5[%c1_230, %c0_231, %c112_232] : memref<4x4x512xf32, #tpu.memory_space<vmem>>, vector<1x4x256xf32>
    %374 = vector.shape_cast %373 : vector<1x4x256xf32> to vector<4x256xf32>
    %c0_233 = arith.constant 0 : index
    %c10_234 = arith.constant 10 : index
    %375 = vector.load %arg3[%c0_233, %c10_234] : memref<4x37xf32, #tpu.memory_space<vmem>>, vector<4x1xf32>
    %376 = vector.broadcast %375 : vector<4x1xf32> to vector<4x256xf32>
    %377 = arith.mulf %376, %374 : vector<4x256xf32>
    %378 = arith.addf %360, %377 : vector<4x256xf32>
    %c1_235 = arith.constant 1 : index
    %c0_236 = arith.constant 0 : index
    %c113_237 = arith.constant 113 : index
    %379 = vector.load %arg5[%c1_235, %c0_236, %c113_237] : memref<4x4x512xf32, #tpu.memory_space<vmem>>, vector<1x4x256xf32>
    %380 = vector.shape_cast %379 : vector<1x4x256xf32> to vector<4x256xf32>
    %c0_238 = arith.constant 0 : index
    %c11_239 = arith.constant 11 : index
    %381 = vector.load %arg3[%c0_238, %c11_239] : memref<4x37xf32, #tpu.memory_space<vmem>>, vector<4x1xf32>
    %382 = vector.broadcast %381 : vector<4x1xf32> to vector<4x256xf32>
    %383 = arith.mulf %382, %380 : vector<4x256xf32>
    %384 = arith.addf %366, %383 : vector<4x256xf32>
    %c1_240 = arith.constant 1 : index
    %c0_241 = arith.constant 0 : index
    %c127_242 = arith.constant 127 : index
    %385 = vector.load %arg5[%c1_240, %c0_241, %c127_242] : memref<4x4x512xf32, #tpu.memory_space<vmem>>, vector<1x4x256xf32>
    %386 = vector.shape_cast %385 : vector<1x4x256xf32> to vector<4x256xf32>
    %c0_243 = arith.constant 0 : index
    %c12_244 = arith.constant 12 : index
    %387 = vector.load %arg3[%c0_243, %c12_244] : memref<4x37xf32, #tpu.memory_space<vmem>>, vector<4x1xf32>
    %388 = vector.broadcast %387 : vector<4x1xf32> to vector<4x256xf32>
    %389 = arith.mulf %388, %386 : vector<4x256xf32>
    %390 = arith.addf %372, %389 : vector<4x256xf32>
    %c1_245 = arith.constant 1 : index
    %c0_246 = arith.constant 0 : index
    %c128_247 = arith.constant 128 : index
    %391 = vector.load %arg5[%c1_245, %c0_246, %c128_247] : memref<4x4x512xf32, #tpu.memory_space<vmem>>, vector<1x4x256xf32>
    %392 = vector.shape_cast %391 : vector<1x4x256xf32> to vector<4x256xf32>
    %c0_248 = arith.constant 0 : index
    %c13_249 = arith.constant 13 : index
    %393 = vector.load %arg3[%c0_248, %c13_249] : memref<4x37xf32, #tpu.memory_space<vmem>>, vector<4x1xf32>
    %394 = vector.broadcast %393 : vector<4x1xf32> to vector<4x256xf32>
    %395 = arith.mulf %394, %392 : vector<4x256xf32>
    %396 = arith.addf %378, %395 : vector<4x256xf32>
    %c1_250 = arith.constant 1 : index
    %c0_251 = arith.constant 0 : index
    %c129_252 = arith.constant 129 : index
    %397 = vector.load %arg5[%c1_250, %c0_251, %c129_252] : memref<4x4x512xf32, #tpu.memory_space<vmem>>, vector<1x4x256xf32>
    %398 = vector.shape_cast %397 : vector<1x4x256xf32> to vector<4x256xf32>
    %c0_253 = arith.constant 0 : index
    %c14_254 = arith.constant 14 : index
    %399 = vector.load %arg3[%c0_253, %c14_254] : memref<4x37xf32, #tpu.memory_space<vmem>>, vector<4x1xf32>
    %400 = vector.broadcast %399 : vector<4x1xf32> to vector<4x256xf32>
    %401 = arith.mulf %400, %398 : vector<4x256xf32>
    %402 = arith.addf %384, %401 : vector<4x256xf32>
    %c1_255 = arith.constant 1 : index
    %c0_256 = arith.constant 0 : index
    %c143_257 = arith.constant 143 : index
    %403 = vector.load %arg5[%c1_255, %c0_256, %c143_257] : memref<4x4x512xf32, #tpu.memory_space<vmem>>, vector<1x4x256xf32>
    %404 = vector.shape_cast %403 : vector<1x4x256xf32> to vector<4x256xf32>
    %c0_258 = arith.constant 0 : index
    %c15_259 = arith.constant 15 : index
    %405 = vector.load %arg3[%c0_258, %c15_259] : memref<4x37xf32, #tpu.memory_space<vmem>>, vector<4x1xf32>
    %406 = vector.broadcast %405 : vector<4x1xf32> to vector<4x256xf32>
    %407 = arith.mulf %406, %404 : vector<4x256xf32>
    %408 = arith.addf %390, %407 : vector<4x256xf32>
    %c1_260 = arith.constant 1 : index
    %c0_261 = arith.constant 0 : index
    %c144_262 = arith.constant 144 : index
    %409 = vector.load %arg5[%c1_260, %c0_261, %c144_262] : memref<4x4x512xf32, #tpu.memory_space<vmem>>, vector<1x4x256xf32>
    %410 = vector.shape_cast %409 : vector<1x4x256xf32> to vector<4x256xf32>
    %c0_263 = arith.constant 0 : index
    %c16_264 = arith.constant 16 : index
    %411 = vector.load %arg3[%c0_263, %c16_264] : memref<4x37xf32, #tpu.memory_space<vmem>>, vector<4x1xf32>
    %412 = vector.broadcast %411 : vector<4x1xf32> to vector<4x256xf32>
    %413 = arith.mulf %412, %410 : vector<4x256xf32>
    %414 = arith.addf %396, %413 : vector<4x256xf32>
    %c1_265 = arith.constant 1 : index
    %c0_266 = arith.constant 0 : index
    %c145_267 = arith.constant 145 : index
    %415 = vector.load %arg5[%c1_265, %c0_266, %c145_267] : memref<4x4x512xf32, #tpu.memory_space<vmem>>, vector<1x4x256xf32>
    %416 = vector.shape_cast %415 : vector<1x4x256xf32> to vector<4x256xf32>
    %c0_268 = arith.constant 0 : index
    %c17_269 = arith.constant 17 : index
    %417 = vector.load %arg3[%c0_268, %c17_269] : memref<4x37xf32, #tpu.memory_space<vmem>>, vector<4x1xf32>
    %418 = vector.broadcast %417 : vector<4x1xf32> to vector<4x256xf32>
    %419 = arith.mulf %418, %416 : vector<4x256xf32>
    %420 = arith.addf %402, %419 : vector<4x256xf32>
    %c2_270 = arith.constant 2 : index
    %c0_271 = arith.constant 0 : index
    %c111_272 = arith.constant 111 : index
    %421 = vector.load %arg5[%c2_270, %c0_271, %c111_272] : memref<4x4x512xf32, #tpu.memory_space<vmem>>, vector<1x4x256xf32>
    %422 = vector.shape_cast %421 : vector<1x4x256xf32> to vector<4x256xf32>
    %c0_273 = arith.constant 0 : index
    %c18_274 = arith.constant 18 : index
    %423 = vector.load %arg3[%c0_273, %c18_274] : memref<4x37xf32, #tpu.memory_space<vmem>>, vector<4x1xf32>
    %424 = vector.broadcast %423 : vector<4x1xf32> to vector<4x256xf32>
    %425 = arith.mulf %424, %422 : vector<4x256xf32>
    %426 = arith.addf %408, %425 : vector<4x256xf32>
    %c2_275 = arith.constant 2 : index
    %c0_276 = arith.constant 0 : index
    %c112_277 = arith.constant 112 : index
    %427 = vector.load %arg5[%c2_275, %c0_276, %c112_277] : memref<4x4x512xf32, #tpu.memory_space<vmem>>, vector<1x4x256xf32>
    %428 = vector.shape_cast %427 : vector<1x4x256xf32> to vector<4x256xf32>
    %c0_278 = arith.constant 0 : index
    %c19_279 = arith.constant 19 : index
    %429 = vector.load %arg3[%c0_278, %c19_279] : memref<4x37xf32, #tpu.memory_space<vmem>>, vector<4x1xf32>
    %430 = vector.broadcast %429 : vector<4x1xf32> to vector<4x256xf32>
    %431 = arith.mulf %430, %428 : vector<4x256xf32>
    %432 = arith.addf %414, %431 : vector<4x256xf32>
    %c2_280 = arith.constant 2 : index
    %c0_281 = arith.constant 0 : index
    %c113_282 = arith.constant 113 : index
    %433 = vector.load %arg5[%c2_280, %c0_281, %c113_282] : memref<4x4x512xf32, #tpu.memory_space<vmem>>, vector<1x4x256xf32>
    %434 = vector.shape_cast %433 : vector<1x4x256xf32> to vector<4x256xf32>
    %c0_283 = arith.constant 0 : index
    %c20_284 = arith.constant 20 : index
    %435 = vector.load %arg3[%c0_283, %c20_284] : memref<4x37xf32, #tpu.memory_space<vmem>>, vector<4x1xf32>
    %436 = vector.broadcast %435 : vector<4x1xf32> to vector<4x256xf32>
    %437 = arith.mulf %436, %434 : vector<4x256xf32>
    %438 = arith.addf %420, %437 : vector<4x256xf32>
    %c2_285 = arith.constant 2 : index
    %c0_286 = arith.constant 0 : index
    %c127_287 = arith.constant 127 : index
    %439 = vector.load %arg5[%c2_285, %c0_286, %c127_287] : memref<4x4x512xf32, #tpu.memory_space<vmem>>, vector<1x4x256xf32>
    %440 = vector.shape_cast %439 : vector<1x4x256xf32> to vector<4x256xf32>
    %c0_288 = arith.constant 0 : index
    %c21_289 = arith.constant 21 : index
    %441 = vector.load %arg3[%c0_288, %c21_289] : memref<4x37xf32, #tpu.memory_space<vmem>>, vector<4x1xf32>
    %442 = vector.broadcast %441 : vector<4x1xf32> to vector<4x256xf32>
    %443 = arith.mulf %442, %440 : vector<4x256xf32>
    %444 = arith.addf %426, %443 : vector<4x256xf32>
    %c2_290 = arith.constant 2 : index
    %c0_291 = arith.constant 0 : index
    %c128_292 = arith.constant 128 : index
    %445 = vector.load %arg5[%c2_290, %c0_291, %c128_292] : memref<4x4x512xf32, #tpu.memory_space<vmem>>, vector<1x4x256xf32>
    %446 = vector.shape_cast %445 : vector<1x4x256xf32> to vector<4x256xf32>
    %c0_293 = arith.constant 0 : index
    %c22_294 = arith.constant 22 : index
    %447 = vector.load %arg3[%c0_293, %c22_294] : memref<4x37xf32, #tpu.memory_space<vmem>>, vector<4x1xf32>
    %448 = vector.broadcast %447 : vector<4x1xf32> to vector<4x256xf32>
    %449 = arith.mulf %448, %446 : vector<4x256xf32>
    %450 = arith.addf %432, %449 : vector<4x256xf32>
    %c2_295 = arith.constant 2 : index
    %c0_296 = arith.constant 0 : index
    %c129_297 = arith.constant 129 : index
    %451 = vector.load %arg5[%c2_295, %c0_296, %c129_297] : memref<4x4x512xf32, #tpu.memory_space<vmem>>, vector<1x4x256xf32>
    %452 = vector.shape_cast %451 : vector<1x4x256xf32> to vector<4x256xf32>
    %c0_298 = arith.constant 0 : index
    %c23_299 = arith.constant 23 : index
    %453 = vector.load %arg3[%c0_298, %c23_299] : memref<4x37xf32, #tpu.memory_space<vmem>>, vector<4x1xf32>
    %454 = vector.broadcast %453 : vector<4x1xf32> to vector<4x256xf32>
    %455 = arith.mulf %454, %452 : vector<4x256xf32>
    %456 = arith.addf %438, %455 : vector<4x256xf32>
    %c2_300 = arith.constant 2 : index
    %c0_301 = arith.constant 0 : index
    %c143_302 = arith.constant 143 : index
    %457 = vector.load %arg5[%c2_300, %c0_301, %c143_302] : memref<4x4x512xf32, #tpu.memory_space<vmem>>, vector<1x4x256xf32>
    %458 = vector.shape_cast %457 : vector<1x4x256xf32> to vector<4x256xf32>
    %c0_303 = arith.constant 0 : index
    %c24_304 = arith.constant 24 : index
    %459 = vector.load %arg3[%c0_303, %c24_304] : memref<4x37xf32, #tpu.memory_space<vmem>>, vector<4x1xf32>
    %460 = vector.broadcast %459 : vector<4x1xf32> to vector<4x256xf32>
    %461 = arith.mulf %460, %458 : vector<4x256xf32>
    %462 = arith.addf %444, %461 : vector<4x256xf32>
    %c2_305 = arith.constant 2 : index
    %c0_306 = arith.constant 0 : index
    %c144_307 = arith.constant 144 : index
    %463 = vector.load %arg5[%c2_305, %c0_306, %c144_307] : memref<4x4x512xf32, #tpu.memory_space<vmem>>, vector<1x4x256xf32>
    %464 = vector.shape_cast %463 : vector<1x4x256xf32> to vector<4x256xf32>
    %c0_308 = arith.constant 0 : index
    %c25_309 = arith.constant 25 : index
    %465 = vector.load %arg3[%c0_308, %c25_309] : memref<4x37xf32, #tpu.memory_space<vmem>>, vector<4x1xf32>
    %466 = vector.broadcast %465 : vector<4x1xf32> to vector<4x256xf32>
    %467 = arith.mulf %466, %464 : vector<4x256xf32>
    %468 = arith.addf %450, %467 : vector<4x256xf32>
    %c2_310 = arith.constant 2 : index
    %c0_311 = arith.constant 0 : index
    %c145_312 = arith.constant 145 : index
    %469 = vector.load %arg5[%c2_310, %c0_311, %c145_312] : memref<4x4x512xf32, #tpu.memory_space<vmem>>, vector<1x4x256xf32>
    %470 = vector.shape_cast %469 : vector<1x4x256xf32> to vector<4x256xf32>
    %c0_313 = arith.constant 0 : index
    %c26_314 = arith.constant 26 : index
    %471 = vector.load %arg3[%c0_313, %c26_314] : memref<4x37xf32, #tpu.memory_space<vmem>>, vector<4x1xf32>
    %472 = vector.broadcast %471 : vector<4x1xf32> to vector<4x256xf32>
    %473 = arith.mulf %472, %470 : vector<4x256xf32>
    %474 = arith.addf %456, %473 : vector<4x256xf32>
    %c3_315 = arith.constant 3 : index
    %c0_316 = arith.constant 0 : index
    %c111_317 = arith.constant 111 : index
    %475 = vector.load %arg5[%c3_315, %c0_316, %c111_317] : memref<4x4x512xf32, #tpu.memory_space<vmem>>, vector<1x4x256xf32>
    %476 = vector.shape_cast %475 : vector<1x4x256xf32> to vector<4x256xf32>
    %c0_318 = arith.constant 0 : index
    %c27_319 = arith.constant 27 : index
    %477 = vector.load %arg3[%c0_318, %c27_319] : memref<4x37xf32, #tpu.memory_space<vmem>>, vector<4x1xf32>
    %478 = vector.broadcast %477 : vector<4x1xf32> to vector<4x256xf32>
    %479 = arith.mulf %478, %476 : vector<4x256xf32>
    %480 = arith.addf %462, %479 : vector<4x256xf32>
    %c3_320 = arith.constant 3 : index
    %c0_321 = arith.constant 0 : index
    %c112_322 = arith.constant 112 : index
    %481 = vector.load %arg5[%c3_320, %c0_321, %c112_322] : memref<4x4x512xf32, #tpu.memory_space<vmem>>, vector<1x4x256xf32>
    %482 = vector.shape_cast %481 : vector<1x4x256xf32> to vector<4x256xf32>
    %c0_323 = arith.constant 0 : index
    %c28_324 = arith.constant 28 : index
    %483 = vector.load %arg3[%c0_323, %c28_324] : memref<4x37xf32, #tpu.memory_space<vmem>>, vector<4x1xf32>
    %484 = vector.broadcast %483 : vector<4x1xf32> to vector<4x256xf32>
    %485 = arith.mulf %484, %482 : vector<4x256xf32>
    %486 = arith.addf %468, %485 : vector<4x256xf32>
    %c3_325 = arith.constant 3 : index
    %c0_326 = arith.constant 0 : index
    %c113_327 = arith.constant 113 : index
    %487 = vector.load %arg5[%c3_325, %c0_326, %c113_327] : memref<4x4x512xf32, #tpu.memory_space<vmem>>, vector<1x4x256xf32>
    %488 = vector.shape_cast %487 : vector<1x4x256xf32> to vector<4x256xf32>
    %c0_328 = arith.constant 0 : index
    %c29_329 = arith.constant 29 : index
    %489 = vector.load %arg3[%c0_328, %c29_329] : memref<4x37xf32, #tpu.memory_space<vmem>>, vector<4x1xf32>
    %490 = vector.broadcast %489 : vector<4x1xf32> to vector<4x256xf32>
    %491 = arith.mulf %490, %488 : vector<4x256xf32>
    %492 = arith.addf %474, %491 : vector<4x256xf32>
    %c3_330 = arith.constant 3 : index
    %c0_331 = arith.constant 0 : index
    %c127_332 = arith.constant 127 : index
    %493 = vector.load %arg5[%c3_330, %c0_331, %c127_332] : memref<4x4x512xf32, #tpu.memory_space<vmem>>, vector<1x4x256xf32>
    %494 = vector.shape_cast %493 : vector<1x4x256xf32> to vector<4x256xf32>
    %c0_333 = arith.constant 0 : index
    %c30_334 = arith.constant 30 : index
    %495 = vector.load %arg3[%c0_333, %c30_334] : memref<4x37xf32, #tpu.memory_space<vmem>>, vector<4x1xf32>
    %496 = vector.broadcast %495 : vector<4x1xf32> to vector<4x256xf32>
    %497 = arith.mulf %496, %494 : vector<4x256xf32>
    %498 = arith.addf %480, %497 : vector<4x256xf32>
    %c3_335 = arith.constant 3 : index
    %c0_336 = arith.constant 0 : index
    %c128_337 = arith.constant 128 : index
    %499 = vector.load %arg5[%c3_335, %c0_336, %c128_337] : memref<4x4x512xf32, #tpu.memory_space<vmem>>, vector<1x4x256xf32>
    %500 = vector.shape_cast %499 : vector<1x4x256xf32> to vector<4x256xf32>
    %c0_338 = arith.constant 0 : index
    %c31_339 = arith.constant 31 : index
    %501 = vector.load %arg3[%c0_338, %c31_339] : memref<4x37xf32, #tpu.memory_space<vmem>>, vector<4x1xf32>
    %502 = vector.broadcast %501 : vector<4x1xf32> to vector<4x256xf32>
    %503 = arith.mulf %502, %500 : vector<4x256xf32>
    %504 = arith.addf %486, %503 : vector<4x256xf32>
    %c3_340 = arith.constant 3 : index
    %c0_341 = arith.constant 0 : index
    %c129_342 = arith.constant 129 : index
    %505 = vector.load %arg5[%c3_340, %c0_341, %c129_342] : memref<4x4x512xf32, #tpu.memory_space<vmem>>, vector<1x4x256xf32>
    %506 = vector.shape_cast %505 : vector<1x4x256xf32> to vector<4x256xf32>
    %c0_343 = arith.constant 0 : index
    %c32_344 = arith.constant 32 : index
    %507 = vector.load %arg3[%c0_343, %c32_344] : memref<4x37xf32, #tpu.memory_space<vmem>>, vector<4x1xf32>
    %508 = vector.broadcast %507 : vector<4x1xf32> to vector<4x256xf32>
    %509 = arith.mulf %508, %506 : vector<4x256xf32>
    %510 = arith.addf %492, %509 : vector<4x256xf32>
    %c3_345 = arith.constant 3 : index
    %c0_346 = arith.constant 0 : index
    %c143_347 = arith.constant 143 : index
    %511 = vector.load %arg5[%c3_345, %c0_346, %c143_347] : memref<4x4x512xf32, #tpu.memory_space<vmem>>, vector<1x4x256xf32>
    %512 = vector.shape_cast %511 : vector<1x4x256xf32> to vector<4x256xf32>
    %c0_348 = arith.constant 0 : index
    %c33_349 = arith.constant 33 : index
    %513 = vector.load %arg3[%c0_348, %c33_349] : memref<4x37xf32, #tpu.memory_space<vmem>>, vector<4x1xf32>
    %514 = vector.broadcast %513 : vector<4x1xf32> to vector<4x256xf32>
    %515 = arith.mulf %514, %512 : vector<4x256xf32>
    %516 = arith.addf %498, %515 : vector<4x256xf32>
    %c3_350 = arith.constant 3 : index
    %c0_351 = arith.constant 0 : index
    %c144_352 = arith.constant 144 : index
    %517 = vector.load %arg5[%c3_350, %c0_351, %c144_352] : memref<4x4x512xf32, #tpu.memory_space<vmem>>, vector<1x4x256xf32>
    %518 = vector.shape_cast %517 : vector<1x4x256xf32> to vector<4x256xf32>
    %c0_353 = arith.constant 0 : index
    %c34_354 = arith.constant 34 : index
    %519 = vector.load %arg3[%c0_353, %c34_354] : memref<4x37xf32, #tpu.memory_space<vmem>>, vector<4x1xf32>
    %520 = vector.broadcast %519 : vector<4x1xf32> to vector<4x256xf32>
    %521 = arith.mulf %520, %518 : vector<4x256xf32>
    %522 = arith.addf %504, %521 : vector<4x256xf32>
    %c3_355 = arith.constant 3 : index
    %c0_356 = arith.constant 0 : index
    %c145_357 = arith.constant 145 : index
    %523 = vector.load %arg5[%c3_355, %c0_356, %c145_357] : memref<4x4x512xf32, #tpu.memory_space<vmem>>, vector<1x4x256xf32>
    %524 = vector.shape_cast %523 : vector<1x4x256xf32> to vector<4x256xf32>
    %c0_358 = arith.constant 0 : index
    %c35_359 = arith.constant 35 : index
    %525 = vector.load %arg3[%c0_358, %c35_359] : memref<4x37xf32, #tpu.memory_space<vmem>>, vector<4x1xf32>
    %526 = vector.broadcast %525 : vector<4x1xf32> to vector<4x256xf32>
    %527 = arith.mulf %526, %524 : vector<4x256xf32>
    %528 = arith.addf %510, %527 : vector<4x256xf32>
    %529 = vector.broadcast %24 : vector<1x256xf32> to vector<4x256xf32>
    %530 = arith.mulf %529, %516 : vector<4x256xf32>
    %531 = arith.addf %522, %530 : vector<4x256xf32>
    %532 = vector.broadcast %28 : vector<1x256xf32> to vector<4x256xf32>
    %533 = arith.mulf %532, %528 : vector<4x256xf32>
    %534 = arith.addf %531, %533 : vector<4x256xf32>
    %535 = arith.addf %30, %534 : vector<4x256xf32>
    %c0_360 = arith.constant 0 : index
    %c0_361 = arith.constant 0 : index
    %c0_362 = arith.constant 0 : index
    %536 = vector.load %arg4[%c0_360, %c0_361, %c0_362] : memref<1x4x256xf32, #tpu.memory_space<vmem>>, vector<1x4x256xf32>
    %537 = vector.shape_cast %536 : vector<1x4x256xf32> to vector<4x256xf32>
    %538 = vector.shape_cast %535 : vector<4x256xf32> to vector<1x4x256xf32>
    tpu.vector_store %arg4[%c0_360, %c0_361, %c0_362], %538 {strides = array<i32>} : memref<1x4x256xf32, #tpu.memory_space<vmem>>, vector<1x4x256xf32>,
    return
  }
  func.func @transform_0(%arg0: i32) -> (i32, i32, i32) {
    %c0_i32 = arith.constant 0 : i32
    %c0_i32_0 = arith.constant 0 : i32
    %c0_i32_1 = arith.constant 0 : i32
    return %arg0, %c0_i32, %c0_i32_0 : i32, i32, i32
  }
  func.func @transform_1(%arg0: i32) -> (i32, i32) {
    %c0_i32 = arith.constant 0 : i32
    %c0_i32_0 = arith.constant 0 : i32
    %c0_i32_1 = arith.constant 0 : i32
    return %c0_i32, %c0_i32_0 : i32, i32
  }
  func.func @transform_2(%arg0: i32) -> (i32, i32) {
    %c0_i32 = arith.constant 0 : i32
    %c0_i32_0 = arith.constant 0 : i32
    %c0_i32_1 = arith.constant 0 : i32
    return %c0_i32, %c0_i32_0 : i32, i32
  }
  func.func @transform_3(%arg0: i32) -> (i32, i32, i32) {
    %c0_i32 = arith.constant 0 : i32
    %c0_i32_0 = arith.constant 0 : i32
    %c0_i32_1 = arith.constant 0 : i32
    return %arg0, %c0_i32, %c0_i32_0 : i32, i32, i32
  }
}

</mosaic_0001>

<llo_original>
// kernel: boundary_refine.1
$region0: #{boundary_refine.1}
  #allocation0 [shape = 'u32[]', space=smem, size = 0x4, offset = 0x4, fixed_abs, tag = 'smem constant byte address 0x4 - core index']
  #allocation1 [shape = 'u32[144,128]{1,0:T(1,128)}', space=vmem, size = 0x12000, scoped, tag = 'internal scratch']
  #allocation2 [shape = 'f32[4,4,512]{2,1,0:T(4,128)}', space=vmem, size = 0x8000, scoped, tag = 'scratch operand']
  %s0 = inlined_call_operand.vmem [shape: f32[2,4,256], index: 0, kind: input, shape index: {}]
  %s1 = inlined_call_operand.vmem [shape: f32[4,37], index: 1, kind: input, shape index: {}]
  %s2 = inlined_call_operand.vmem [shape: f32[4,37], index: 2, kind: input, shape index: {}]
  %s3 = inlined_call_operand.vmem [shape: f32[2,4,256], index: 3, kind: output, shape index: {}]
  %s4 = sld [smem:[#allocation0]]
  $region45: #{boundary_refine.1} parent=0
    _
  %s6 = ssub.s32 1, %s4
  %s7 = scalar_select 0, %s6, %s4
  loop: start=0, step=1, limit=4
  $region2: #{boundary_refine.1} parent=0 // loop_pre_header
    _
  $region3: #{boundary_refine.1} parent=0 // loop_header
    %s9 = sphi 0, %s13
    %p10 = scmp.ge.s32.totalorder %s9, 4
    %s19 = sphi 0, %s21
    %s22 = sphi 0, %s19
    %s23 = sphi 0, %s22
    %s39 = sphi 0, %s23
    %s43 = sphi 0, %s43
    %s45 = sphi 0, %s43
    %s46 = sphi 0, %s45
    %s60 = sphi 0, %s46
    %s64 = sphi 0, %s64
    %s66 = sphi 0, %s64
    %s67 = sphi 0, %s66
    %s81 = sphi 0, %s67
    %s87 = sphi 0, %s89
    %s90 = sphi 0, %s87
    %s91 = sphi 0, %s90
    %s107 = sphi 0, %s91
  $region4: #{boundary_refine.1} parent=0 // loop_header_branch
    %12 = sbr.rel (%p10) target = $region8
  $region5: #{boundary_refine.1} parent=0 // loop_body
    %s14 = ssub.s32 %s9, 1
    %s15 = ssub.s32 %s9, 2
    %s16 = sadd.s32 %s9, 1
    %s17 = ssub.s32 %s9, %s16
    %p18 = scmp.eq.s32.totalorder %s17, 0
    %s20 = sadd.s32 %s19, 1
    %s21 = scalar_select %p18, %s19, %s20
    %p24 = pneg %p18
    %p25 = scmp.eq.s32.totalorder %s9, 1
    %p26 = por %p24, %p25
    %p27 = scmp.ne.s32.totalorder %s19, %s22
    %p28 = scmp.eq.s32.totalorder %s9, 0
    %p29 = por %p27, %p28
    %p30 = scmp.ne.s32.totalorder %s19, %s22
    %p31 = scmp.eq.s32.totalorder %s14, 1
    %p32 = por %p30, %p31
    %p33 = scmp.ne.s32.totalorder %s22, %s23
    %p34 = scmp.eq.s32.totalorder %s14, 0
    %p35 = por %p33, %p34
    %p36 = scmp.ne.s32.totalorder %s22, %s23
    %p37 = scmp.eq.s32.totalorder %s15, 1
    %p38 = por %p36, %p37
    %p40 = scmp.ne.s32.totalorder %s23, %s39
    %p41 = scmp.eq.s32.totalorder %s15, 0
    %p42 = por %p40, %p41
    %s44 = sadd.s32 %s43, 1
    %p47 = scmp.eq.s32.totalorder %s9, 1
    %p48 = scmp.ne.s32.totalorder %s43, %s45
    %p49 = scmp.eq.s32.totalorder %s9, 0
    %p50 = por %p48, %p49
    %p51 = scmp.ne.s32.totalorder %s43, %s45
    %p52 = scmp.eq.s32.totalorder %s14, 1
    %p53 = por %p51, %p52
    %p54 = scmp.ne.s32.totalorder %s45, %s46
    %p55 = scmp.eq.s32.totalorder %s14, 0
    %p56 = por %p54, %p55
    %p57 = scmp.ne.s32.totalorder %s45, %s46
    %p58 = scmp.eq.s32.totalorder %s15, 1
    %p59 = por %p57, %p58
    %p61 = scmp.ne.s32.totalorder %s46, %s60
    %p62 = scmp.eq.s32.totalorder %s15, 0
    %p63 = por %p61, %p62
    %s65 = sadd.s32 %s64, 1
    %p68 = scmp.eq.s32.totalorder %s9, 1
    %p69 = scmp.ne.s32.totalorder %s64, %s66
    %p70 = scmp.eq.s32.totalorder %s9, 0
    %p71 = por %p69, %p70
    %p72 = scmp.ne.s32.totalorder %s64, %s66
    %p73 = scmp.eq.s32.totalorder %s14, 1
    %p74 = por %p72, %p73
    %p75 = scmp.ne.s32.totalorder %s66, %s67
    %p76 = scmp.eq.s32.totalorder %s14, 0
    %p77 = por %p75, %p76
    %p78 = scmp.ne.s32.totalorder %s66, %s67
    %p79 = scmp.eq.s32.totalorder %s15, 1
    %p80 = por %p78, %p79
    %p82 = scmp.ne.s32.totalorder %s67, %s81
    %p83 = scmp.eq.s32.totalorder %s15, 0
    %p84 = por %p82, %p83
    %s85 = ssub.s32 %s9, %s16
    %p86 = scmp.eq.s32.totalorder %s85, 0
    %s88 = sadd.s32 %s87, 1
    %s89 = scalar_select %p86, %s87, %s88
    %p92 = pneg %p86
    %p93 = scmp.eq.s32.totalorder %s9, 1
    %p94 = por %p92, %p93
    %p95 = scmp.ne.s32.totalorder %s87, %s90
    %p96 = scmp.eq.s32.totalorder %s9, 0
    %p97 = por %p95, %p96
    %p98 = scmp.ne.s32.totalorder %s87, %s90
    %p99 = scmp.eq.s32.totalorder %s14, 1
    %p100 = por %p98, %p99
    %p101 = scmp.ne.s32.totalorder %s90, %s91
    %p102 = scmp.eq.s32.totalorder %s14, 0
    %p103 = por %p101, %p102
    %p104 = scmp.ne.s32.totalorder %s90, %s91
    %p105 = scmp.eq.s32.totalorder %s15, 1
    %p106 = por %p104, %p105
    %p108 = scmp.ne.s32.totalorder %s91, %s107
    %p109 = scmp.eq.s32.totalorder %s15, 0
    %p110 = por %p108, %p109
    %p111 = scmp.le.s32.totalorder 1, %s9
    %p112 = scmp.lt.s32.totalorder %s9, 3
    %p113 = pnand %p111, %p112
    %p114 = pneg %p113
    // Predicated region
    $region9: #{boundary_refine.1} parent=5 // pred_check
      _
    $region10: #{boundary_refine.1} parent=5 // pred_check_branch
      %116 = sbr.rel (%p113) target = $region12
    $region11: #{boundary_refine.1} parent=5 // pred_region
      %s117 = ssub.s32 %s9, 1
      // Predicated region
      $region13: #{boundary_refine.1} parent=11 // pred_check
        %p118 = pneg %p56
      $region14: #{boundary_refine.1} parent=11 // pred_check_branch
        %120 = sbr.rel (%p118) target = $region16
      $region15: #{boundary_refine.1} parent=11 // pred_region
        _
      $region16: #{boundary_refine.1} parent=11 // pred_fallthru
        _
      // Predicated region
      $region17: #{boundary_refine.1} parent=11 // pred_check
        %p121 = pneg %p77
      $region18: #{boundary_refine.1} parent=11 // pred_check_branch
        %123 = sbr.rel (%p121) target = $region20
      $region19: #{boundary_refine.1} parent=11 // pred_region
        _
      $region20: #{boundary_refine.1} parent=11 // pred_fallthru
        _
    $region12: #{boundary_refine.1} parent=5 // pred_fallthru
      _
    %p124 = scmp.lt.s32.totalorder %s9, 2
    // Predicated region
    $region21: #{boundary_refine.1} parent=5 // pred_check
      %p125 = pneg %p124
    $region22: #{boundary_refine.1} parent=5 // pred_check_branch
      %127 = sbr.rel (%p125) target = $region24
    $region23: #{boundary_refine.1} parent=5 // pred_region
      // Predicated region
      $region25: #{boundary_refine.1} parent=23 // pred_check
        %p128 = pneg %p29
      $region26: #{boundary_refine.1} parent=23 // pred_check_branch
        %130 = sbr.rel (%p128) target = $region28
      $region27: #{boundary_refine.1} parent=23 // pred_region
        %p131 = scmp.lt.s32.totalorder %s9, 1
        %s132 = scalar_select %p131, %s9, 1
        %s133 = smul.addr %s132, 2
        %s134 = smul.addr %s133, 4
        %s135 = scalar_lea.vmem %s0, %s134
      $region28: #{boundary_refine.1} parent=23 // pred_fallthru
        _
    $region24: #{boundary_refine.1} parent=5 // pred_fallthru
      _
    %p136 = scmp.le.s32.totalorder 1, %s9
    %p137 = scmp.lt.s32.totalorder %s9, 3
    %p138 = pnand %p136, %p137
    %p139 = pneg %p138
    // Predicated region
    $region29: #{boundary_refine.1} parent=5 // pred_check
      _
    $region30: #{boundary_refine.1} parent=5 // pred_check_branch
      %141 = sbr.rel (%p138) target = $region32
    $region31: #{boundary_refine.1} parent=5 // pred_region
      %s142 = ssub.s32 %s9, 1
      %p143 = scmp.lt.s32.totalorder %s14, 1
      %s144 = scalar_select %p143, %s14, 1
      %s145 = smul.addr %s144, 2
      %s146 = smul.addr %s145, 4
      %s147 = scalar_lea.vmem %s0, %s146
      %p148 = pneg %p35
      %p149 = pneg %p32
      %p150 = pneg %p56
      %p151 = pneg %p53
      %p152 = pneg %p77
      %p153 = pneg %p74
      %p154 = pneg %p103
      %p155 = pneg %p100
      %p156 = scmp.lt.s32.totalorder %s14, 1
      %s157 = scalar_select %p156, %s14, 1
      %s158 = smul.addr %s157, 2
      %s159 = smul.addr %s158, 4
      %s160 = scalar_lea.vmem %s3, %s159
      %p161 = scmp.lt.s32.totalorder %s14, 1
      %s162 = scalar_select %p161, %s14, 1
      %s163 = smul.addr %s162, 2
      %s164 = smul.addr %s163, 4
      %s165 = scalar_lea.vmem %s0, %s164
      %p166 = scmp.lt.s32.totalorder %s14, 1
      %s167 = scalar_select %p166, %s14, 1
      %s168 = smul.addr %s167, 2
      %s169 = smul.addr %s168, 4
      %s170 = scalar_lea.vmem %s3, %s169
      %171 = vst [vmem:[#allocation2] sm:$0xf] 0.0
      %172 = vst [vmem:[#allocation2 + $0x10] sm:$0xf] 0.0
      %173 = vst [vmem:[#allocation2 + $0x20] sm:$0xf] 0.0
      %174 = vst [vmem:[#allocation2 + $0x30] sm:$0xf] 0.0
      %175 = vst [vmem:[#allocation2 + $0xc] sm:$0xf] 0.0
      %176 = vst [vmem:[#allocation2 + $0x1c] sm:$0xf] 0.0
      %177 = vst [vmem:[#allocation2 + $0x2c] sm:$0xf] 0.0
      %178 = vst [vmem:[#allocation2 + $0x3c] sm:$0xf] 0.0
      %v179 = vlaneseq
      %v180 = vand.u32 %v179, 127
      %v181 = vadd.s32 %v180, 128
      %vm182 = vcmp.lt.s32.totalorder %v180, 0
      %v183 = vsub.s32 0, %v180
      %v184 = vsel %vm182, %v183, %v180
      %v185 = vshrl.u32 %v184, 4
      %v186 = vand.u32 %v184, 15
      %v187 = vsub.s32 0, %v186
      %v188 = vsel %vm182, %v187, %v186
      %vm189 = vcmp.lt.s32.totalorder %v181, 0
      %v190 = vsub.s32 0, %v181
      %v191 = vsel %vm189, %v190, %v181
      %v192 = vshrl.u32 %v191, 4
      %v193 = vand.u32 %v191, 15
      %v194 = vsub.s32 0, %v193
      %v195 = vsel %vm189, %v194, %v193
      %vm196 = vcmp.ne.s32.totalorder %v188, 0
      %vm197 = vcmp.ne.s32.totalorder %v195, 0
      %vm198 = vcmp.lt.s32.totalorder %v188, 0
      %vm199 = vcmp.lt.s32.totalorder %v195, 0
      %vm200 = vmand %vm198, %vm196
      %vm201 = vmand %vm199, %vm197
      %v202 = vadd.s32 %v188, 16
      %v203 = vadd.s32 %v195, 16
      %v204 = vsel %vm200, %v202, %v188
      %v205 = vsel %vm201, %v203, %v195
      %vm206 = vcmp.ne.s32.totalorder %v204, 0
      %vm207 = vcmp.ne.s32.totalorder %v205, 0
      %v208 = vsel %vm206, 1, 0
      %v209 = vsel %vm207, 1, 0
      %v210 = vcvt.s32.f32 %v208
      %v211 = vcvt.s32.f32 %v209
      %vm212 = vcmp.ne.s32.totalorder %v204, 15
      %vm213 = vcmp.ne.s32.totalorder %v205, 15
      %v214 = vsel %vm212, 1, 0
      %v215 = vsel %vm213, 1, 0
      %v216 = vcvt.s32.f32 %v214
      %v217 = vcvt.s32.f32 %v215
      %v218 = vld [vmem:[%s165] sm:$0xff]
      %v220 = vlaneseq
      %v221 = vshrl.u32 %v220, 7
      %v222 = vsub.s32 0, %v221
      %v223 = vrot.slane %v218, %v222
      %v224 = vlaneseq
      %v225 = vshrl.u32 %v224, 7
      %v226 = vsub.s32 4, %v225
      %v227 = vrot.slane %v218, %v226
      %v230 = vlaneseq
      %v231 = vshrl.u32 %v230, 7
      %v232 = vsub.s32 0, %v231
      %v233 = vrot.slane %v223, %v232
      %v234 = vlaneseq
      %v235 = vshrl.u32 %v234, 7
      %v236 = vsub.s32 0, %v235
      %v237 = vrot.slane %v227, %v236
      %v240 = vcombine.low %v233, %v237
      %242 = vst [vmem:[#allocation2 + $0x4] sm:$0xff] %v240
      %v243 = vlaneseq
      %v244 = vshrl.u32 %v243, 7
      %v245 = vsub.s32 1, %v244
      %v246 = vrot.slane %v218, %v245
      %v247 = vlaneseq
      %v248 = vshrl.u32 %v247, 7
      %v249 = vsub.s32 5, %v248
      %v250 = vrot.slane %v218, %v249
      %v253 = vlaneseq
      %v254 = vshrl.u32 %v253, 7
      %v255 = vsub.s32 1, %v254
      %v256 = vrot.slane %v246, %v255
      %v257 = vlaneseq
      %v258 = vshrl.u32 %v257, 7
      %v259 = vsub.s32 1, %v258
      %v260 = vrot.slane %v250, %v259
      %v263 = vcombine.low %v256, %v260
      %s265 = scalar_lea.vmem [#allocation2], 16
      %266 = vst [vmem:[%s265 + $0x4] sm:$0xff] %v263
      %v267 = vlaneseq
      %v268 = vshrl.u32 %v267, 7
      %v269 = vsub.s32 2, %v268
      %v270 = vrot.slane %v218, %v269
      %v271 = vlaneseq
      %v272 = vshrl.u32 %v271, 7
      %v273 = vsub.s32 6, %v272
      %v274 = vrot.slane %v218, %v273
      %v277 = vlaneseq
      %v278 = vshrl.u32 %v277, 7
      %v279 = vsub.s32 2, %v278
      %v280 = vrot.slane %v270, %v279
      %v281 = vlaneseq
      %v282 = vshrl.u32 %v281, 7
      %v283 = vsub.s32 2, %v282
      %v284 = vrot.slane %v274, %v283
      %v287 = vcombine.low %v280, %v284
      %s289 = scalar_lea.vmem [#allocation2], 32
      %290 = vst [vmem:[%s289 + $0x4] sm:$0xff] %v287
      %v291 = vlaneseq
      %v292 = vshrl.u32 %v291, 7
      %v293 = vsub.s32 3, %v292
      %v294 = vrot.slane %v218, %v293
      %v295 = vlaneseq
      %v296 = vshrl.u32 %v295, 7
      %v297 = vsub.s32 7, %v296
      %v298 = vrot.slane %v218, %v297
      %v301 = vlaneseq
      %v302 = vshrl.u32 %v301, 7
      %v303 = vsub.s32 3, %v302
      %v304 = vrot.slane %v294, %v303
      %v305 = vlaneseq
      %v306 = vshrl.u32 %v305, 7
      %v307 = vsub.s32 3, %v306
      %v308 = vrot.slane %v298, %v307
      %v311 = vcombine.low %v304, %v308
      %s313 = scalar_lea.vmem [#allocation2], 48
      %314 = vst [vmem:[%s313 + $0x4] sm:$0xff] %v311
      %v315 = vld [vmem:[%s1] sm:$0xf]
      %317 = vset.pattern.permute.xlu0 36
      %318 = vperm.xlu0 %317, %v315
      %v319 = vpop.permute.xlu0 %318
      %v321 = vld [vmem:[#allocation2] sm:$0xff]
      %v322 = vld [vmem:[#allocation2 + $0x8] sm:$0xf]
      %323 = vset.pattern.permute.xlu0 0
      %324 = vperm.xlu0 %323, %v315
      %v325 = vpop.permute.xlu0 %324
      %v329 = vcombine.high %v321, %v321
      %330 = vrot.lane.b32.xlu0 %v321, 17
      %v331 = vpop.permute.xlu0 %330
      %332 = vrot.lane.b32.xlu0 %v329, 17
      %v333 = vpop.permute.xlu0 %332
      %334 = vrot.lane.b32.xlu0 %v322, 17
      %v335 = vpop.permute.xlu0 %334
      %vm336 = vcmask 138240
      %v337 = vsel %vm336, %v331, %v333
      %v338 = vsel %vm336, %v333, %v335
      %v341 = vmul.f32 %v325, %v337
      %v342 = vmul.f32 %v325, %v338
      %v343 = vadd.f32 %v341, 0.0
      %v344 = vadd.f32 %v342, 0.0
      %v345 = vld [vmem:[#allocation2] sm:$0xff]
      %v346 = vld [vmem:[#allocation2 + $0x8] sm:$0xf]
      %v347 = vld [vmem:[%s1] sm:$0xf]
      %349 = vset.pattern.permute.xlu0 1
      %350 = vperm.xlu0 %349, %v347
      %v351 = vpop.permute.xlu0 %350
      %v355 = vcombine.high %v345, %v345
      %356 = vrot.lane.b32.xlu0 %v345, 16
      %v357 = vpop.permute.xlu0 %356
      %358 = vrot.lane.b32.xlu0 %v355, 16
      %v359 = vpop.permute.xlu0 %358
      %360 = vrot.lane.b32.xlu0 %v346, 16
      %v361 = vpop.permute.xlu0 %360
      %vm362 = vcmask 130048
      %v363 = vsel %vm362, %v357, %v359
      %v364 = vsel %vm362, %v359, %v361
      %v367 = vmul.f32 %v351, %v363
      %v368 = vmul.f32 %v351, %v364
      %v369 = vadd.f32 %v319, %v367
      %v370 = vadd.f32 %v319, %v368
      %v371 = vld [vmem:[#allocation2] sm:$0xff]
      %v372 = vld [vmem:[#allocation2 + $0x8] sm:$0xf]
      %v373 = vld [vmem:[%s1] sm:$0xf]
      %375 = vset.pattern.permute.xlu0 2
      %376 = vperm.xlu0 %375, %v373
      %v377 = vpop.permute.xlu0 %376
      %v381 = vcombine.high %v371, %v371
      %382 = vrot.lane.b32.xlu0 %v371, 15
      %v383 = vpop.permute.xlu0 %382
      %384 = vrot.lane.b32.xlu0 %v381, 15
      %v385 = vpop.permute.xlu0 %384
      %386 = vrot.lane.b32.xlu0 %v372, 15
      %v387 = vpop.permute.xlu0 %386
      %vm388 = vcmask 121856
      %v389 = vsel %vm388, %v383, %v385
      %v390 = vsel %vm388, %v385, %v387
      %v393 = vmul.f32 %v377, %v389
      %v394 = vmul.f32 %v377, %v390
      %v395 = vadd.f32 %v393, 0.0
      %v396 = vadd.f32 %v394, 0.0
      %v397 = vld [vmem:[#allocation2] sm:$0xff]
      %v398 = vld [vmem:[#allocation2 + $0x8] sm:$0xf]
      %v399 = vld [vmem:[%s1] sm:$0xf]
      %401 = vset.pattern.permute.xlu0 3
      %402 = vperm.xlu0 %401, %v399
      %v403 = vpop.permute.xlu0 %402
      %v407 = vcombine.high %v397, %v397
      %408 = vrot.lane.b32.xlu0 %v397, 1
      %v409 = vpop.permute.xlu0 %408
      %410 = vrot.lane.b32.xlu0 %v407, 1
      %v411 = vpop.permute.xlu0 %410
      %412 = vrot.lane.b32.xlu0 %v398, 1
      %v413 = vpop.permute.xlu0 %412
      %vm414 = vcmask 7168
      %v415 = vsel %vm414, %v409, %v411
      %v416 = vsel %vm414, %v411, %v413
      %v419 = vmul.f32 %v403, %v415
      %v420 = vmul.f32 %v403, %v416
      %v421 = vadd.f32 %v343, %v419
      %v422 = vadd.f32 %v344, %v420
      %v423 = vld [vmem:[#allocation2 + $0x4] sm:$0xff]
      %v424 = vld [vmem:[%s1] sm:$0xf]
      %426 = vset.pattern.permute.xlu0 4
      %427 = vperm.xlu0 %426, %v424
      %v428 = vpop.permute.xlu0 %427
      %v431 = vcombine.high %v423, %v423
      %v433 = vmul.f32 %v428, %v423
      %v434 = vmul.f32 %v428, %v431
      %v435 = vadd.f32 %v369, %v433
      %v436 = vadd.f32 %v370, %v434
      %v437 = vld [vmem:[#allocation2 + $0x4] sm:$0xff]
      %v438 = vld [vmem:[#allocation2 + $0xc] sm:$0xf]
      %v439 = vld [vmem:[%s1] sm:$0xf]
      %441 = vset.pattern.permute.xlu0 5
      %442 = vperm.xlu0 %441, %v439
      %v443 = vpop.permute.xlu0 %442
      %v447 = vcombine.high %v437, %v437
      %448 = vrot.lane.b32.xlu0 %v437, 127
      %v449 = vpop.permute.xlu0 %448
      %450 = vrot.lane.b32.xlu0 %v447, 127
      %v451 = vpop.permute.xlu0 %450
      %452 = vrot.lane.b32.xlu0 %v438, 127
      %v453 = vpop.permute.xlu0 %452
      %vm454 = vcmask 1039360
      %v455 = vsel %vm454, %v449, %v451
      %v456 = vsel %vm454, %v451, %v453
      %v459 = vmul.f32 %v443, %v455
      %v460 = vmul.f32 %v443, %v456
      %v461 = vadd.f32 %v395, %v459
      %v462 = vadd.f32 %v396, %v460
      %v463 = vld [vmem:[#allocation2 + $0x4] sm:$0xff]
      %v464 = vld [vmem:[#allocation2 + $0xc] sm:$0xf]
      %v465 = vld [vmem:[%s1] sm:$0xf]
      %467 = vset.pattern.permute.xlu0 6
      %468 = vperm.xlu0 %467, %v465
      %v469 = vpop.permute.xlu0 %468
      %v473 = vcombine.high %v463, %v463
      %474 = vrot.lane.b32.xlu0 %v463, 113
      %v475 = vpop.permute.xlu0 %474
      %476 = vrot.lane.b32.xlu0 %v473, 113
      %v477 = vpop.permute.xlu0 %476
      %478 = vrot.lane.b32.xlu0 %v464, 113
      %v479 = vpop.permute.xlu0 %478
      %vm480 = vcmask 924672
      %v481 = vsel %vm480, %v475, %v477
      %v482 = vsel %vm480, %v477, %v479
      %v485 = vmul.f32 %v469, %v481
      %v486 = vmul.f32 %v469, %v482
      %v487 = vadd.f32 %v421, %v485
      %v488 = vadd.f32 %v422, %v486
      %v489 = vld [vmem:[#allocation2 + $0x4] sm:$0xff]
      %v490 = vld [vmem:[#allocation2 + $0xc] sm:$0xf]
      %v491 = vld [vmem:[%s1] sm:$0xf]
      %493 = vset.pattern.permute.xlu0 7
      %494 = vperm.xlu0 %493, %v491
      %v495 = vpop.permute.xlu0 %494
      %v499 = vcombine.high %v489, %v489
      %500 = vrot.lane.b32.xlu0 %v489, 112
      %v501 = vpop.permute.xlu0 %500
      %502 = vrot.lane.b32.xlu0 %v499, 112
      %v503 = vpop.permute.xlu0 %502
      %504 = vrot.lane.b32.xlu0 %v490, 112
      %v505 = vpop.permute.xlu0 %504
      %vm506 = vcmask 916480
      %v507 = vsel %vm506, %v501, %v503
      %v508 = vsel %vm506, %v503, %v505
      %v511 = vmul.f32 %v495, %v507
      %v512 = vmul.f32 %v495, %v508
      %v513 = vadd.f32 %v435, %v511
      %v514 = vadd.f32 %v436, %v512
      %v515 = vld [vmem:[#allocation2 + $0x4] sm:$0xff]
      %v516 = vld [vmem:[#allocation2 + $0xc] sm:$0xf]
      %v517 = vld [vmem:[%s1] sm:$0xf]
      %519 = vset.pattern.permute.xlu0 8
      %520 = vperm.xlu0 %519, %v517
      %v521 = vpop.permute.xlu0 %520
      %v525 = vcombine.high %v515, %v515
      %526 = vrot.lane.b32.xlu0 %v515, 111
      %v527 = vpop.permute.xlu0 %526
      %528 = vrot.lane.b32.xlu0 %v525, 111
      %v529 = vpop.permute.xlu0 %528
      %530 = vrot.lane.b32.xlu0 %v516, 111
      %v531 = vpop.permute.xlu0 %530
      %vm532 = vcmask 908288
      %v533 = vsel %vm532, %v527, %v529
      %v534 = vsel %vm532, %v529, %v531
      %v537 = vmul.f32 %v521, %v533
      %v538 = vmul.f32 %v521, %v534
      %v539 = vadd.f32 %v461, %v537
      %v540 = vadd.f32 %v462, %v538
      %v541 = vld [vmem:[%s265] sm:$0xff]
      %v542 = vld [vmem:[%s265 + $0x8] sm:$0xf]
      %v543 = vld [vmem:[%s1] sm:$0xf]
      %545 = vset.pattern.permute.xlu0 9
      %546 = vperm.xlu0 %545, %v543
      %v547 = vpop.permute.xlu0 %546
      %v551 = vcombine.high %v541, %v541
      %552 = vrot.lane.b32.xlu0 %v541, 17
      %v553 = vpop.permute.xlu0 %552
      %554 = vrot.lane.b32.xlu0 %v551, 17
      %v555 = vpop.permute.xlu0 %554
      %556 = vrot.lane.b32.xlu0 %v542, 17
      %v557 = vpop.permute.xlu0 %556
      %v558 = vsel %vm336, %v553, %v555
      %v559 = vsel %vm336, %v555, %v557
      %v562 = vmul.f32 %v547, %v558
      %v563 = vmul.f32 %v547, %v559
      %v564 = vadd.f32 %v487, %v562
      %v565 = vadd.f32 %v488, %v563
      %v566 = vld [vmem:[%s265] sm:$0xff]
      %v567 = vld [vmem:[%s265 + $0x8] sm:$0xf]
      %v568 = vld [vmem:[%s1] sm:$0xf]
      %570 = vset.pattern.permute.xlu0 10
      %571 = vperm.xlu0 %570, %v568
      %v572 = vpop.permute.xlu0 %571
      %v576 = vcombine.high %v566, %v566
      %577 = vrot.lane.b32.xlu0 %v566, 16
      %v578 = vpop.permute.xlu0 %577
      %579 = vrot.lane.b32.xlu0 %v576, 16
      %v580 = vpop.permute.xlu0 %579
      %581 = vrot.lane.b32.xlu0 %v567, 16
      %v582 = vpop.permute.xlu0 %581
      %v583 = vsel %vm362, %v578, %v580
      %v584 = vsel %vm362, %v580, %v582
      %v587 = vmul.f32 %v572, %v583
      %v588 = vmul.f32 %v572, %v584
      %v589 = vadd.f32 %v513, %v587
      %v590 = vadd.f32 %v514, %v588
      %v591 = vld [vmem:[%s265] sm:$0xff]
      %v592 = vld [vmem:[%s265 + $0x8] sm:$0xf]
      %v593 = vld [vmem:[%s1] sm:$0xf]
      %595 = vset.pattern.permute.xlu0 11
      %596 = vperm.xlu0 %595, %v593
      %v597 = vpop.permute.xlu0 %596
      %v601 = vcombine.high %v591, %v591
      %602 = vrot.lane.b32.xlu0 %v591, 15
      %v603 = vpop.permute.xlu0 %602
      %604 = vrot.lane.b32.xlu0 %v601, 15
      %v605 = vpop.permute.xlu0 %604
      %606 = vrot.lane.b32.xlu0 %v592, 15
      %v607 = vpop.permute.xlu0 %606
      %v608 = vsel %vm388, %v603, %v605
      %v609 = vsel %vm388, %v605, %v607
      %v612 = vmul.f32 %v597, %v608
      %v613 = vmul.f32 %v597, %v609
      %v614 = vadd.f32 %v539, %v612
      %v615 = vadd.f32 %v540, %v613
      %v616 = vld [vmem:[%s265] sm:$0xff]
      %v617 = vld [vmem:[%s265 + $0x8] sm:$0xf]
      %v618 = vld [vmem:[%s1] sm:$0xf]
      %620 = vset.pattern.permute.xlu0 12
      %621 = vperm.xlu0 %620, %v618
      %v622 = vpop.permute.xlu0 %621
      %v626 = vcombine.high %v616, %v616
      %627 = vrot.lane.b32.xlu0 %v616, 1
      %v628 = vpop.permute.xlu0 %627
      %629 = vrot.lane.b32.xlu0 %v626, 1
      %v630 = vpop.permute.xlu0 %629
      %631 = vrot.lane.b32.xlu0 %v617, 1
      %v632 = vpop.permute.xlu0 %631
      %v633 = vsel %vm414, %v628, %v630
      %v634 = vsel %vm414, %v630, %v632
      %v637 = vmul.f32 %v622, %v633
      %v638 = vmul.f32 %v622, %v634
      %v639 = vadd.f32 %v564, %v637
      %v640 = vadd.f32 %v565, %v638
      %v641 = vld [vmem:[%s265 + $0x4] sm:$0xff]
      %v642 = vld [vmem:[%s1] sm:$0xf]
      %644 = vset.pattern.permute.xlu0 13
      %645 = vperm.xlu0 %644, %v642
      %v646 = vpop.permute.xlu0 %645
      %v649 = vcombine.high %v641, %v641
      %v651 = vmul.f32 %v646, %v641
      %v652 = vmul.f32 %v646, %v649
      %v653 = vadd.f32 %v589, %v651
      %v654 = vadd.f32 %v590, %v652
      %v655 = vld [vmem:[%s265 + $0x4] sm:$0xff]
      %v656 = vld [vmem:[%s265 + $0xc] sm:$0xf]
      %v657 = vld [vmem:[%s1] sm:$0xf]
      %659 = vset.pattern.permute.xlu0 14
      %660 = vperm.xlu0 %659, %v657
      %v661 = vpop.permute.xlu0 %660
      %v665 = vcombine.high %v655, %v655
      %666 = vrot.lane.b32.xlu0 %v655, 127
      %v667 = vpop.permute.xlu0 %666
      %668 = vrot.lane.b32.xlu0 %v665, 127
      %v669 = vpop.permute.xlu0 %668
      %670 = vrot.lane.b32.xlu0 %v656, 127
      %v671 = vpop.permute.xlu0 %670
      %v672 = vsel %vm454, %v667, %v669
      %v673 = vsel %vm454, %v669, %v671
      %v676 = vmul.f32 %v661, %v672
      %v677 = vmul.f32 %v661, %v673
      %v678 = vadd.f32 %v614, %v676
      %v679 = vadd.f32 %v615, %v677
      %v680 = vld [vmem:[%s265 + $0x4] sm:$0xff]
      %v681 = vld [vmem:[%s265 + $0xc] sm:$0xf]
      %v682 = vld [vmem:[%s1] sm:$0xf]
      %684 = vset.pattern.permute.xlu0 15
      %685 = vperm.xlu0 %684, %v682
      %v686 = vpop.permute.xlu0 %685
      %v690 = vcombine.high %v680, %v680
      %691 = vrot.lane.b32.xlu0 %v680, 113
      %v692 = vpop.permute.xlu0 %691
      %693 = vrot.lane.b32.xlu0 %v690, 113
      %v694 = vpop.permute.xlu0 %693
      %695 = vrot.lane.b32.xlu0 %v681, 113
      %v696 = vpop.permute.xlu0 %695
      %v697 = vsel %vm480, %v692, %v694
      %v698 = vsel %vm480, %v694, %v696
      %v701 = vmul.f32 %v686, %v697
      %v702 = vmul.f32 %v686, %v698
      %v703 = vadd.f32 %v639, %v701
      %v704 = vadd.f32 %v640, %v702
      %v705 = vld [vmem:[%s265 + $0x4] sm:$0xff]
      %v706 = vld [vmem:[%s265 + $0xc] sm:$0xf]
      %v707 = vld [vmem:[%s1] sm:$0xf]
      %709 = vset.pattern.permute.xlu0 16
      %710 = vperm.xlu0 %709, %v707
      %v711 = vpop.permute.xlu0 %710
      %v715 = vcombine.high %v705, %v705
      %716 = vrot.lane.b32.xlu0 %v705, 112
      %v717 = vpop.permute.xlu0 %716
      %718 = vrot.lane.b32.xlu0 %v715, 112
      %v719 = vpop.permute.xlu0 %718
      %720 = vrot.lane.b32.xlu0 %v706, 112
      %v721 = vpop.permute.xlu0 %720
      %v722 = vsel %vm506, %v717, %v719
      %v723 = vsel %vm506, %v719, %v721
      %v726 = vmul.f32 %v711, %v722
      %v727 = vmul.f32 %v711, %v723
      %v728 = vadd.f32 %v653, %v726
      %v729 = vadd.f32 %v654, %v727
      %v730 = vld [vmem:[%s265 + $0x4] sm:$0xff]
      %v731 = vld [vmem:[%s265 + $0xc] sm:$0xf]
      %v732 = vld [vmem:[%s1] sm:$0xf]
      %734 = vset.pattern.permute.xlu0 17
      %735 = vperm.xlu0 %734, %v732
      %v736 = vpop.permute.xlu0 %735
      %v740 = vcombine.high %v730, %v730
      %741 = vrot.lane.b32.xlu0 %v730, 111
      %v742 = vpop.permute.xlu0 %741
      %743 = vrot.lane.b32.xlu0 %v740, 111
      %v744 = vpop.permute.xlu0 %743
      %745 = vrot.lane.b32.xlu0 %v731, 111
      %v746 = vpop.permute.xlu0 %745
      %v747 = vsel %vm532, %v742, %v744
      %v748 = vsel %vm532, %v744, %v746
      %v751 = vmul.f32 %v736, %v747
      %v752 = vmul.f32 %v736, %v748
      %v753 = vadd.f32 %v678, %v751
      %v754 = vadd.f32 %v679, %v752
      %v755 = vld [vmem:[%s289] sm:$0xff]
      %v756 = vld [vmem:[%s289 + $0x8] sm:$0xf]
      %v757 = vld [vmem:[%s1] sm:$0xf]
      %759 = vset.pattern.permute.xlu0 18
      %760 = vperm.xlu0 %759, %v757
      %v761 = vpop.permute.xlu0 %760
      %v765 = vcombine.high %v755, %v755
      %766 = vrot.lane.b32.xlu0 %v755, 17
      %v767 = vpop.permute.xlu0 %766
      %768 = vrot.lane.b32.xlu0 %v765, 17
      %v769 = vpop.permute.xlu0 %768
      %770 = vrot.lane.b32.xlu0 %v756, 17
      %v771 = vpop.permute.xlu0 %770
      %v772 = vsel %vm336, %v767, %v769
      %v773 = vsel %vm336, %v769, %v771
      %v776 = vmul.f32 %v761, %v772
      %v777 = vmul.f32 %v761, %v773
      %v778 = vadd.f32 %v703, %v776
      %v779 = vadd.f32 %v704, %v777
      %v780 = vld [vmem:[%s289] sm:$0xff]
      %v781 = vld [vmem:[%s289 + $0x8] sm:$0xf]
      %v782 = vld [vmem:[%s1] sm:$0xf]
      %784 = vset.pattern.permute.xlu0 19
      %785 = vperm.xlu0 %784, %v782
      %v786 = vpop.permute.xlu0 %785
      %v790 = vcombine.high %v780, %v780
      %791 = vrot.lane.b32.xlu0 %v780, 16
      %v792 = vpop.permute.xlu0 %791
      %793 = vrot.lane.b32.xlu0 %v790, 16
      %v794 = vpop.permute.xlu0 %793
      %795 = vrot.lane.b32.xlu0 %v781, 16
      %v796 = vpop.permute.xlu0 %795
      %v797 = vsel %vm362, %v792, %v794
      %v798 = vsel %vm362, %v794, %v796
      %v801 = vmul.f32 %v786, %v797
      %v802 = vmul.f32 %v786, %v798
      %v803 = vadd.f32 %v728, %v801
      %v804 = vadd.f32 %v729, %v802
      %v805 = vld [vmem:[%s289] sm:$0xff]
      %v806 = vld [vmem:[%s289 + $0x8] sm:$0xf]
      %v807 = vld [vmem:[%s1] sm:$0xf]
      %809 = vset.pattern.permute.xlu0 20
      %810 = vperm.xlu0 %809, %v807
      %v811 = vpop.permute.xlu0 %810
      %v815 = vcombine.high %v805, %v805
      %816 = vrot.lane.b32.xlu0 %v805, 15
      %v817 = vpop.permute.xlu0 %816
      %818 = vrot.lane.b32.xlu0 %v815, 15
      %v819 = vpop.permute.xlu0 %818
      %820 = vrot.lane.b32.xlu0 %v806, 15
      %v821 = vpop.permute.xlu0 %820
      %v822 = vsel %vm388, %v817, %v819
      %v823 = vsel %vm388, %v819, %v821
      %v826 = vmul.f32 %v811, %v822
      %v827 = vmul.f32 %v811, %v823
      %v828 = vadd.f32 %v753, %v826
      %v829 = vadd.f32 %v754, %v827
      %v830 = vld [vmem:[%s289] sm:$0xff]
      %v831 = vld [vmem:[%s289 + $0x8] sm:$0xf]
      %v832 = vld [vmem:[%s1] sm:$0xf]
      %834 = vset.pattern.permute.xlu0 21
      %835 = vperm.xlu0 %834, %v832
      %v836 = vpop.permute.xlu0 %835
      %v840 = vcombine.high %v830, %v830
      %841 = vrot.lane.b32.xlu0 %v830, 1
      %v842 = vpop.permute.xlu0 %841
      %843 = vrot.lane.b32.xlu0 %v840, 1
      %v844 = vpop.permute.xlu0 %843
      %845 = vrot.lane.b32.xlu0 %v831, 1
      %v846 = vpop.permute.xlu0 %845
      %v847 = vsel %vm414, %v842, %v844
      %v848 = vsel %vm414, %v844, %v846
      %v851 = vmul.f32 %v836, %v847
      %v852 = vmul.f32 %v836, %v848
      %v853 = vadd.f32 %v778, %v851
      %v854 = vadd.f32 %v779, %v852
      %v855 = vld [vmem:[%s289 + $0x4] sm:$0xff]
      %v856 = vld [vmem:[%s1] sm:$0xf]
      %858 = vset.pattern.permute.xlu0 22
      %859 = vperm.xlu0 %858, %v856
      %v860 = vpop.permute.xlu0 %859
      %v863 = vcombine.high %v855, %v855
      %v865 = vmul.f32 %v860, %v855
      %v866 = vmul.f32 %v860, %v863
      %v867 = vadd.f32 %v803, %v865
      %v868 = vadd.f32 %v804, %v866
      %v869 = vld [vmem:[%s289 + $0x4] sm:$0xff]
      %v870 = vld [vmem:[%s289 + $0xc] sm:$0xf]
      %v871 = vld [vmem:[%s1] sm:$0xf]
      %873 = vset.pattern.permute.xlu0 23
      %874 = vperm.xlu0 %873, %v871
      %v875 = vpop.permute.xlu0 %874
      %v879 = vcombine.high %v869, %v869
      %880 = vrot.lane.b32.xlu0 %v869, 127
      %v881 = vpop.permute.xlu0 %880
      %882 = vrot.lane.b32.xlu0 %v879, 127
      %v883 = vpop.permute.xlu0 %882
      %884 = vrot.lane.b32.xlu0 %v870, 127
      %v885 = vpop.permute.xlu0 %884
      %v886 = vsel %vm454, %v881, %v883
      %v887 = vsel %vm454, %v883, %v885
      %v890 = vmul.f32 %v875, %v886
      %v891 = vmul.f32 %v875, %v887
      %v892 = vadd.f32 %v828, %v890
      %v893 = vadd.f32 %v829, %v891
      %v894 = vld [vmem:[%s289 + $0x4] sm:$0xff]
      %v895 = vld [vmem:[%s289 + $0xc] sm:$0xf]
      %v896 = vld [vmem:[%s1] sm:$0xf]
      %898 = vset.pattern.permute.xlu0 24
      %899 = vperm.xlu0 %898, %v896
      %v900 = vpop.permute.xlu0 %899
      %v904 = vcombine.high %v894, %v894
      %905 = vrot.lane.b32.xlu0 %v894, 113
      %v906 = vpop.permute.xlu0 %905
      %907 = vrot.lane.b32.xlu0 %v904, 113
      %v908 = vpop.permute.xlu0 %907
      %909 = vrot.lane.b32.xlu0 %v895, 113
      %v910 = vpop.permute.xlu0 %909
      %v911 = vsel %vm480, %v906, %v908
      %v912 = vsel %vm480, %v908, %v910
      %v915 = vmul.f32 %v900, %v911
      %v916 = vmul.f32 %v900, %v912
      %v917 = vadd.f32 %v853, %v915
      %v918 = vadd.f32 %v854, %v916
      %v919 = vld [vmem:[%s289 + $0x4] sm:$0xff]
      %v920 = vld [vmem:[%s289 + $0xc] sm:$0xf]
      %v921 = vld [vmem:[%s1] sm:$0xf]
      %923 = vset.pattern.permute.xlu0 25
      %924 = vperm.xlu0 %923, %v921
      %v925 = vpop.permute.xlu0 %924
      %v929 = vcombine.high %v919, %v919
      %930 = vrot.lane.b32.xlu0 %v919, 112
      %v931 = vpop.permute.xlu0 %930
      %932 = vrot.lane.b32.xlu0 %v929, 112
      %v933 = vpop.permute.xlu0 %932
      %934 = vrot.lane.b32.xlu0 %v920, 112
      %v935 = vpop.permute.xlu0 %934
      %v936 = vsel %vm506, %v931, %v933
      %v937 = vsel %vm506, %v933, %v935
      %v940 = vmul.f32 %v925, %v936
      %v941 = vmul.f32 %v925, %v937
      %v942 = vadd.f32 %v867, %v940
      %v943 = vadd.f32 %v868, %v941
      %v944 = vld [vmem:[%s289 + $0x4] sm:$0xff]
      %v945 = vld [vmem:[%s289 + $0xc] sm:$0xf]
      %v946 = vld [vmem:[%s1] sm:$0xf]
      %948 = vset.pattern.permute.xlu0 26
      %949 = vperm.xlu0 %948, %v946
      %v950 = vpop.permute.xlu0 %949
      %v954 = vcombine.high %v944, %v944
      %955 = vrot.lane.b32.xlu0 %v944, 111
      %v956 = vpop.permute.xlu0 %955
      %957 = vrot.lane.b32.xlu0 %v954, 111
      %v958 = vpop.permute.xlu0 %957
      %959 = vrot.lane.b32.xlu0 %v945, 111
      %v960 = vpop.permute.xlu0 %959
      %v961 = vsel %vm532, %v956, %v958
      %v962 = vsel %vm532, %v958, %v960
      %v965 = vmul.f32 %v950, %v961
      %v966 = vmul.f32 %v950, %v962
      %v967 = vadd.f32 %v892, %v965
      %v968 = vadd.f32 %v893, %v966
      %v969 = vld [vmem:[%s313] sm:$0xff]
      %v970 = vld [vmem:[%s313 + $0x8] sm:$0xf]
      %v971 = vld [vmem:[%s1] sm:$0xf]
      %973 = vset.pattern.permute.xlu0 27
      %974 = vperm.xlu0 %973, %v971
      %v975 = vpop.permute.xlu0 %974
      %v979 = vcombine.high %v969, %v969
      %980 = vrot.lane.b32.xlu0 %v969, 17
      %v981 = vpop.permute.xlu0 %980
      %982 = vrot.lane.b32.xlu0 %v979, 17
      %v983 = vpop.permute.xlu0 %982
      %984 = vrot.lane.b32.xlu0 %v970, 17
      %v985 = vpop.permute.xlu0 %984
      %v986 = vsel %vm336, %v981, %v983
      %v987 = vsel %vm336, %v983, %v985
      %v990 = vmul.f32 %v975, %v986
      %v991 = vmul.f32 %v975, %v987
      %v992 = vadd.f32 %v917, %v990
      %v993 = vadd.f32 %v918, %v991
      %v994 = vld [vmem:[%s313] sm:$0xff]
      %v995 = vld [vmem:[%s313 + $0x8] sm:$0xf]
      %v996 = vld [vmem:[%s1] sm:$0xf]
      %998 = vset.pattern.permute.xlu0 28
      %999 = vperm.xlu0 %998, %v996
      %v1000 = vpop.permute.xlu0 %999
      %v1004 = vcombine.high %v994, %v994
      %1005 = vrot.lane.b32.xlu0 %v994, 16
      %v1006 = vpop.permute.xlu0 %1005
      %1007 = vrot.lane.b32.xlu0 %v1004, 16
      %v1008 = vpop.permute.xlu0 %1007
      %1009 = vrot.lane.b32.xlu0 %v995, 16
      %v1010 = vpop.permute.xlu0 %1009
      %v1011 = vsel %vm362, %v1006, %v1008
      %v1012 = vsel %vm362, %v1008, %v1010
      %v1015 = vmul.f32 %v1000, %v1011
      %v1016 = vmul.f32 %v1000, %v1012
      %v1017 = vadd.f32 %v942, %v1015
      %v1018 = vadd.f32 %v943, %v1016
      %v1019 = vld [vmem:[%s313] sm:$0xff]
      %v1020 = vld [vmem:[%s313 + $0x8] sm:$0xf]
      %v1021 = vld [vmem:[%s1] sm:$0xf]
      %1023 = vset.pattern.permute.xlu0 29
      %1024 = vperm.xlu0 %1023, %v1021
      %v1025 = vpop.permute.xlu0 %1024
      %v1029 = vcombine.high %v1019, %v1019
      %1030 = vrot.lane.b32.xlu0 %v1019, 15
      %v1031 = vpop.permute.xlu0 %1030
      %1032 = vrot.lane.b32.xlu0 %v1029, 15
      %v1033 = vpop.permute.xlu0 %1032
      %1034 = vrot.lane.b32.xlu0 %v1020, 15
      %v1035 = vpop.permute.xlu0 %1034
      %v1036 = vsel %vm388, %v1031, %v1033
      %v1037 = vsel %vm388, %v1033, %v1035
      %v1040 = vmul.f32 %v1025, %v1036
      %v1041 = vmul.f32 %v1025, %v1037
      %v1042 = vadd.f32 %v967, %v1040
      %v1043 = vadd.f32 %v968, %v1041
      %v1044 = vld [vmem:[%s313] sm:$0xff]
      %v1045 = vld [vmem:[%s313 + $0x8] sm:$0xf]
      %v1046 = vld [vmem:[%s1] sm:$0xf]
      %1048 = vset.pattern.permute.xlu0 30
      %1049 = vperm.xlu0 %1048, %v1046
      %v1050 = vpop.permute.xlu0 %1049
      %v1054 = vcombine.high %v1044, %v1044
      %1055 = vrot.lane.b32.xlu0 %v1044, 1
      %v1056 = vpop.permute.xlu0 %1055
      %1057 = vrot.lane.b32.xlu0 %v1054, 1
      %v1058 = vpop.permute.xlu0 %1057
      %1059 = vrot.lane.b32.xlu0 %v1045, 1
      %v1060 = vpop.permute.xlu0 %1059
      %v1061 = vsel %vm414, %v1056, %v1058
      %v1062 = vsel %vm414, %v1058, %v1060
      %v1065 = vmul.f32 %v1050, %v1061
      %v1066 = vmul.f32 %v1050, %v1062
      %v1067 = vadd.f32 %v992, %v1065
      %v1068 = vadd.f32 %v993, %v1066
      %v1069 = vld [vmem:[%s313 + $0x4] sm:$0xff]
      %v1070 = vld [vmem:[%s1] sm:$0xf]
      %1072 = vset.pattern.permute.xlu0 31
      %1073 = vperm.xlu0 %1072, %v1070
      %v1074 = vpop.permute.xlu0 %1073
      %v1077 = vcombine.high %v1069, %v1069
      %v1079 = vmul.f32 %v1074, %v1069
      %v1080 = vmul.f32 %v1074, %v1077
      %v1081 = vadd.f32 %v1017, %v1079
      %v1082 = vadd.f32 %v1018, %v1080
      %v1083 = vld [vmem:[%s313 + $0x4] sm:$0xff]
      %v1084 = vld [vmem:[%s313 + $0xc] sm:$0xf]
      %v1085 = vld [vmem:[%s1] sm:$0xf]
      %1087 = vset.pattern.permute.xlu0 32
      %1088 = vperm.xlu0 %1087, %v1085
      %v1089 = vpop.permute.xlu0 %1088
      %v1093 = vcombine.high %v1083, %v1083
      %1094 = vrot.lane.b32.xlu0 %v1083, 127
      %v1095 = vpop.permute.xlu0 %1094
      %1096 = vrot.lane.b32.xlu0 %v1093, 127
      %v1097 = vpop.permute.xlu0 %1096
      %1098 = vrot.lane.b32.xlu0 %v1084, 127
      %v1099 = vpop.permute.xlu0 %1098
      %v1100 = vsel %vm454, %v1095, %v1097
      %v1101 = vsel %vm454, %v1097, %v1099
      %v1104 = vmul.f32 %v1089, %v1100
      %v1105 = vmul.f32 %v1089, %v1101
      %v1106 = vadd.f32 %v1042, %v1104
      %v1107 = vadd.f32 %v1043, %v1105
      %v1108 = vld [vmem:[%s313 + $0x4] sm:$0xff]
      %v1109 = vld [vmem:[%s313 + $0xc] sm:$0xf]
      %v1110 = vld [vmem:[%s1] sm:$0xf]
      %1112 = vset.pattern.permute.xlu0 33
      %1113 = vperm.xlu0 %1112, %v1110
      %v1114 = vpop.permute.xlu0 %1113
      %v1118 = vcombine.high %v1108, %v1108
      %1119 = vrot.lane.b32.xlu0 %v1108, 113
      %v1120 = vpop.permute.xlu0 %1119
      %1121 = vrot.lane.b32.xlu0 %v1118, 113
      %v1122 = vpop.permute.xlu0 %1121
      %1123 = vrot.lane.b32.xlu0 %v1109, 113
      %v1124 = vpop.permute.xlu0 %1123
      %v1125 = vsel %vm480, %v1120, %v1122
      %v1126 = vsel %vm480, %v1122, %v1124
      %v1129 = vmul.f32 %v1114, %v1125
      %v1130 = vmul.f32 %v1114, %v1126
      %v1131 = vadd.f32 %v1067, %v1129
      %v1132 = vadd.f32 %v1068, %v1130
      %v1133 = vld [vmem:[%s313 + $0x4] sm:$0xff]
      %v1134 = vld [vmem:[%s313 + $0xc] sm:$0xf]
      %v1135 = vld [vmem:[%s1] sm:$0xf]
      %1137 = vset.pattern.permute.xlu0 34
      %1138 = vperm.xlu0 %1137, %v1135
      %v1139 = vpop.permute.xlu0 %1138
      %v1143 = vcombine.high %v1133, %v1133
      %1144 = vrot.lane.b32.xlu0 %v1133, 112
      %v1145 = vpop.permute.xlu0 %1144
      %1146 = vrot.lane.b32.xlu0 %v1143, 112
      %v1147 = vpop.permute.xlu0 %1146
      %1148 = vrot.lane.b32.xlu0 %v1134, 112
      %v1149 = vpop.permute.xlu0 %1148
      %v1150 = vsel %vm506, %v1145, %v1147
      %v1151 = vsel %vm506, %v1147, %v1149
      %v1154 = vmul.f32 %v1139, %v1150
      %v1155 = vmul.f32 %v1139, %v1151
      %v1156 = vadd.f32 %v1081, %v1154
      %v1157 = vadd.f32 %v1082, %v1155
      %v1158 = vld [vmem:[%s313 + $0x4] sm:$0xff]
      %v1159 = vld [vmem:[%s313 + $0xc] sm:$0xf]
      %v1160 = vld [vmem:[%s1] sm:$0xf]
      %1162 = vset.pattern.permute.xlu0 35
      %1163 = vperm.xlu0 %1162, %v1160
      %v1164 = vpop.permute.xlu0 %1163
      %v1168 = vcombine.high %v1158, %v1158
      %1169 = vrot.lane.b32.xlu0 %v1158, 111
      %v1170 = vpop.permute.xlu0 %1169
      %1171 = vrot.lane.b32.xlu0 %v1168, 111
      %v1172 = vpop.permute.xlu0 %1171
      %1173 = vrot.lane.b32.xlu0 %v1159, 111
      %v1174 = vpop.permute.xlu0 %1173
      %v1175 = vsel %vm532, %v1170, %v1172
      %v1176 = vsel %vm532, %v1172, %v1174
      %v1179 = vmul.f32 %v1164, %v1175
      %v1180 = vmul.f32 %v1164, %v1176
      %v1181 = vadd.f32 %v1106, %v1179
      %v1182 = vadd.f32 %v1107, %v1180
      %v1183 = vmul.f32 %v210, %v1131
      %v1184 = vmul.f32 %v211, %v1132
      %v1185 = vadd.f32 %v1156, %v1183
      %v1186 = vadd.f32 %v1157, %v1184
      %v1187 = vmul.f32 %v216, %v1181
      %v1188 = vmul.f32 %v217, %v1182
      %v1189 = vadd.f32 %v1185, %v1187
      %v1190 = vadd.f32 %v1186, %v1188
      %v1191 = vmax.f32 %v1189, 0.0
      %v1192 = vmax.f32 %v1190, 0.0
      %v1193 = vlaneseq
      %v1194 = vshrl.u32 %v1193, 7
      %v1195 = vsub.s32 0, %v1194
      %v1196 = vrot.slane %v1191, %v1195
      %v1197 = vlaneseq
      %v1198 = vshrl.u32 %v1197, 7
      %v1199 = vsub.s32 0, %v1198
      %v1200 = vrot.slane %v1192, %v1199
      %v1203 = vcombine.low %v1196, %v1200
      %1205 = vst [vmem:[#allocation2 + $0x4] sm:$0xff] %v1203
      %v1206 = vlaneseq
      %v1207 = vshrl.u32 %v1206, 7
      %v1208 = vsub.s32 1, %v1207
      %v1209 = vrot.slane %v1191, %v1208
      %v1210 = vlaneseq
      %v1211 = vshrl.u32 %v1210, 7
      %v1212 = vsub.s32 1, %v1211
      %v1213 = vrot.slane %v1192, %v1212
      %v1216 = vcombine.low %v1209, %v1213
      %1218 = vst [vmem:[%s265 + $0x4] sm:$0xff] %v1216
      %v1219 = vlaneseq
      %v1220 = vshrl.u32 %v1219, 7
      %v1221 = vsub.s32 2, %v1220
      %v1222 = vrot.slane %v1191, %v1221
      %v1223 = vlaneseq
      %v1224 = vshrl.u32 %v1223, 7
      %v1225 = vsub.s32 2, %v1224
      %v1226 = vrot.slane %v1192, %v1225
      %v1229 = vcombine.low %v1222, %v1226
      %1231 = vst [vmem:[%s289 + $0x4] sm:$0xff] %v1229
      %v1232 = vlaneseq
      %v1233 = vshrl.u32 %v1232, 7
      %v1234 = vsub.s32 3, %v1233
      %v1235 = vrot.slane %v1191, %v1234
      %v1236 = vlaneseq
      %v1237 = vshrl.u32 %v1236, 7
      %v1238 = vsub.s32 3, %v1237
      %v1239 = vrot.slane %v1192, %v1238
      %v1242 = vcombine.low %v1235, %v1239
      %1244 = vst [vmem:[%s313 + $0x4] sm:$0xff] %v1242
      %v1245 = vld [vmem:[%s2] sm:$0xf]
      %1247 = vset.pattern.permute.xlu0 36
      %1248 = vperm.xlu0 %1247, %v1245
      %v1249 = vpop.permute.xlu0 %1248
      %v1251 = vld [vmem:[#allocation2] sm:$0xff]
      %v1252 = vld [vmem:[#allocation2 + $0x8] sm:$0xf]
      %1253 = vset.pattern.permute.xlu0 0
      %1254 = vperm.xlu0 %1253, %v1245
      %v1255 = vpop.permute.xlu0 %1254
      %v1259 = vcombine.high %v1251, %v1251
      %1260 = vrot.lane.b32.xlu0 %v1251, 17
      %v1261 = vpop.permute.xlu0 %1260
      %1262 = vrot.lane.b32.xlu0 %v1259, 17
      %v1263 = vpop.permute.xlu0 %1262
      %1264 = vrot.lane.b32.xlu0 %v1252, 17
      %v1265 = vpop.permute.xlu0 %1264
      %v1266 = vsel %vm336, %v1261, %v1263
      %v1267 = vsel %vm336, %v1263, %v1265
      %v1270 = vmul.f32 %v1255, %v1266
      %v1271 = vmul.f32 %v1255, %v1267
      %v1272 = vadd.f32 %v1270, 0.0
      %v1273 = vadd.f32 %v1271, 0.0
      %v1274 = vld [vmem:[#allocation2] sm:$0xff]
      %v1275 = vld [vmem:[#allocation2 + $0x8] sm:$0xf]
      %v1276 = vld [vmem:[%s2] sm:$0xf]
      %1278 = vset.pattern.permute.xlu0 1
      %1279 = vperm.xlu0 %1278, %v1276
      %v1280 = vpop.permute.xlu0 %1279
      %v1284 = vcombine.high %v1274, %v1274
      %1285 = vrot.lane.b32.xlu0 %v1274, 16
      %v1286 = vpop.permute.xlu0 %1285
      %1287 = vrot.lane.b32.xlu0 %v1284, 16
      %v1288 = vpop.permute.xlu0 %1287
      %1289 = vrot.lane.b32.xlu0 %v1275, 16
      %v1290 = vpop.permute.xlu0 %1289
      %v1291 = vsel %vm362, %v1286, %v1288
      %v1292 = vsel %vm362, %v1288, %v1290
      %v1295 = vmul.f32 %v1280, %v1291
      %v1296 = vmul.f32 %v1280, %v1292
      %v1297 = vadd.f32 %v1249, %v1295
      %v1298 = vadd.f32 %v1249, %v1296
      %v1299 = vld [vmem:[#allocation2] sm:$0xff]
      %v1300 = vld [vmem:[#allocation2 + $0x8] sm:$0xf]
      %v1301 = vld [vmem:[%s2] sm:$0xf]
      %1303 = vset.pattern.permute.xlu0 2
      %1304 = vperm.xlu0 %1303, %v1301
      %v1305 = vpop.permute.xlu0 %1304
      %v1309 = vcombine.high %v1299, %v1299
      %1310 = vrot.lane.b32.xlu0 %v1299, 15
      %v1311 = vpop.permute.xlu0 %1310
      %1312 = vrot.lane.b32.xlu0 %v1309, 15
      %v1313 = vpop.permute.xlu0 %1312
      %1314 = vrot.lane.b32.xlu0 %v1300, 15
      %v1315 = vpop.permute.xlu0 %1314
      %v1316 = vsel %vm388, %v1311, %v1313
      %v1317 = vsel %vm388, %v1313, %v1315
      %v1320 = vmul.f32 %v1305, %v1316
      %v1321 = vmul.f32 %v1305, %v1317
      %v1322 = vadd.f32 %v1320, 0.0
      %v1323 = vadd.f32 %v1321, 0.0
      %v1324 = vld [vmem:[#allocation2] sm:$0xff]
      %v1325 = vld [vmem:[#allocation2 + $0x8] sm:$0xf]
      %v1326 = vld [vmem:[%s2] sm:$0xf]
      %1328 = vset.pattern.permute.xlu0 3
      %1329 = vperm.xlu0 %1328, %v1326
      %v1330 = vpop.permute.xlu0 %1329
      %v1334 = vcombine.high %v1324, %v1324
      %1335 = vrot.lane.b32.xlu0 %v1324, 1
      %v1336 = vpop.permute.xlu0 %1335
      %1337 = vrot.lane.b32.xlu0 %v1334, 1
      %v1338 = vpop.permute.xlu0 %1337
      %1339 = vrot.lane.b32.xlu0 %v1325, 1
      %v1340 = vpop.permute.xlu0 %1339
      %v1341 = vsel %vm414, %v1336, %v1338
      %v1342 = vsel %vm414, %v1338, %v1340
      %v1345 = vmul.f32 %v1330, %v1341
      %v1346 = vmul.f32 %v1330, %v1342
      %v1347 = vadd.f32 %v1272, %v1345
      %v1348 = vadd.f32 %v1273, %v1346
      %v1349 = vld [vmem:[#allocation2 + $0x4] sm:$0xff]
      %v1350 = vld [vmem:[%s2] sm:$0xf]
      %1352 = vset.pattern.permute.xlu0 4
      %1353 = vperm.xlu0 %1352, %v1350
      %v1354 = vpop.permute.xlu0 %1353
      %v1357 = vcombine.high %v1349, %v1349
      %v1359 = vmul.f32 %v1354, %v1349
      %v1360 = vmul.f32 %v1354, %v1357
      %v1361 = vadd.f32 %v1297, %v1359
      %v1362 = vadd.f32 %v1298, %v1360
      %v1363 = vld [vmem:[#allocation2 + $0x4] sm:$0xff]
      %v1364 = vld [vmem:[#allocation2 + $0xc] sm:$0xf]
      %v1365 = vld [vmem:[%s2] sm:$0xf]
      %1367 = vset.pattern.permute.xlu0 5
      %1368 = vperm.xlu0 %1367, %v1365
      %v1369 = vpop.permute.xlu0 %1368
      %v1373 = vcombine.high %v1363, %v1363
      %1374 = vrot.lane.b32.xlu0 %v1363, 127
      %v1375 = vpop.permute.xlu0 %1374
      %1376 = vrot.lane.b32.xlu0 %v1373, 127
      %v1377 = vpop.permute.xlu0 %1376
      %1378 = vrot.lane.b32.xlu0 %v1364, 127
      %v1379 = vpop.permute.xlu0 %1378
      %v1380 = vsel %vm454, %v1375, %v1377
      %v1381 = vsel %vm454, %v1377, %v1379
      %v1384 = vmul.f32 %v1369, %v1380
      %v1385 = vmul.f32 %v1369, %v1381
      %v1386 = vadd.f32 %v1322, %v1384
      %v1387 = vadd.f32 %v1323, %v1385
      %v1388 = vld [vmem:[#allocation2 + $0x4] sm:$0xff]
      %v1389 = vld [vmem:[#allocation2 + $0xc] sm:$0xf]
      %v1390 = vld [vmem:[%s2] sm:$0xf]
      %1392 = vset.pattern.permute.xlu0 6
      %1393 = vperm.xlu0 %1392, %v1390
      %v1394 = vpop.permute.xlu0 %1393
      %v1398 = vcombine.high %v1388, %v1388
      %1399 = vrot.lane.b32.xlu0 %v1388, 113
      %v1400 = vpop.permute.xlu0 %1399
      %1401 = vrot.lane.b32.xlu0 %v1398, 113
      %v1402 = vpop.permute.xlu0 %1401
      %1403 = vrot.lane.b32.xlu0 %v1389, 113
      %v1404 = vpop.permute.xlu0 %1403
      %v1405 = vsel %vm480, %v1400, %v1402
      %v1406 = vsel %vm480, %v1402, %v1404
      %v1409 = vmul.f32 %v1394, %v1405
      %v1410 = vmul.f32 %v1394, %v1406
      %v1411 = vadd.f32 %v1347, %v1409
      %v1412 = vadd.f32 %v1348, %v1410
      %v1413 = vld [vmem:[#allocation2 + $0x4] sm:$0xff]
      %v1414 = vld [vmem:[#allocation2 + $0xc] sm:$0xf]
      %v1415 = vld [vmem:[%s2] sm:$0xf]
      %1417 = vset.pattern.permute.xlu0 7
      %1418 = vperm.xlu0 %1417, %v1415
      %v1419 = vpop.permute.xlu0 %1418
      %v1423 = vcombine.high %v1413, %v1413
      %1424 = vrot.lane.b32.xlu0 %v1413, 112
      %v1425 = vpop.permute.xlu0 %1424
      %1426 = vrot.lane.b32.xlu0 %v1423, 112
      %v1427 = vpop.permute.xlu0 %1426
      %1428 = vrot.lane.b32.xlu0 %v1414, 112
      %v1429 = vpop.permute.xlu0 %1428
      %v1430 = vsel %vm506, %v1425, %v1427
      %v1431 = vsel %vm506, %v1427, %v1429
      %v1434 = vmul.f32 %v1419, %v1430
      %v1435 = vmul.f32 %v1419, %v1431
      %v1436 = vadd.f32 %v1361, %v1434
      %v1437 = vadd.f32 %v1362, %v1435
      %v1438 = vld [vmem:[#allocation2 + $0x4] sm:$0xff]
      %v1439 = vld [vmem:[#allocation2 + $0xc] sm:$0xf]
      %v1440 = vld [vmem:[%s2] sm:$0xf]
      %1442 = vset.pattern.permute.xlu0 8
      %1443 = vperm.xlu0 %1442, %v1440
      %v1444 = vpop.permute.xlu0 %1443
      %v1448 = vcombine.high %v1438, %v1438
      %1449 = vrot.lane.b32.xlu0 %v1438, 111
      %v1450 = vpop.permute.xlu0 %1449
      %1451 = vrot.lane.b32.xlu0 %v1448, 111
      %v1452 = vpop.permute.xlu0 %1451
      %1453 = vrot.lane.b32.xlu0 %v1439, 111
      %v1454 = vpop.permute.xlu0 %1453
      %v1455 = vsel %vm532, %v1450, %v1452
      %v1456 = vsel %vm532, %v1452, %v1454
      %v1459 = vmul.f32 %v1444, %v1455
      %v1460 = vmul.f32 %v1444, %v1456
      %v1461 = vadd.f32 %v1386, %v1459
      %v1462 = vadd.f32 %v1387, %v1460
      %v1463 = vld [vmem:[%s265] sm:$0xff]
      %v1464 = vld [vmem:[%s265 + $0x8] sm:$0xf]
      %v1465 = vld [vmem:[%s2] sm:$0xf]
      %1467 = vset.pattern.permute.xlu0 9
      %1468 = vperm.xlu0 %1467, %v1465
      %v1469 = vpop.permute.xlu0 %1468
      %v1473 = vcombine.high %v1463, %v1463
      %1474 = vrot.lane.b32.xlu0 %v1463, 17
      %v1475 = vpop.permute.xlu0 %1474
      %1476 = vrot.lane.b32.xlu0 %v1473, 17
      %v1477 = vpop.permute.xlu0 %1476
      %1478 = vrot.lane.b32.xlu0 %v1464, 17
      %v1479 = vpop.permute.xlu0 %1478
      %v1480 = vsel %vm336, %v1475, %v1477
      %v1481 = vsel %vm336, %v1477, %v1479
      %v1484 = vmul.f32 %v1469, %v1480
      %v1485 = vmul.f32 %v1469, %v1481
      %v1486 = vadd.f32 %v1411, %v1484
      %v1487 = vadd.f32 %v1412, %v1485
      %v1488 = vld [vmem:[%s265] sm:$0xff]
      %v1489 = vld [vmem:[%s265 + $0x8] sm:$0xf]
      %v1490 = vld [vmem:[%s2] sm:$0xf]
      %1492 = vset.pattern.permute.xlu0 10
      %1493 = vperm.xlu0 %1492, %v1490
      %v1494 = vpop.permute.xlu0 %1493
      %v1498 = vcombine.high %v1488, %v1488
      %1499 = vrot.lane.b32.xlu0 %v1488, 16
      %v1500 = vpop.permute.xlu0 %1499
      %1501 = vrot.lane.b32.xlu0 %v1498, 16
      %v1502 = vpop.permute.xlu0 %1501
      %1503 = vrot.lane.b32.xlu0 %v1489, 16
      %v1504 = vpop.permute.xlu0 %1503
      %v1505 = vsel %vm362, %v1500, %v1502
      %v1506 = vsel %vm362, %v1502, %v1504
      %v1509 = vmul.f32 %v1494, %v1505
      %v1510 = vmul.f32 %v1494, %v1506
      %v1511 = vadd.f32 %v1436, %v1509
      %v1512 = vadd.f32 %v1437, %v1510
      %v1513 = vld [vmem:[%s265] sm:$0xff]
      %v1514 = vld [vmem:[%s265 + $0x8] sm:$0xf]
      %v1515 = vld [vmem:[%s2] sm:$0xf]
      %1517 = vset.pattern.permute.xlu0 11
      %1518 = vperm.xlu0 %1517, %v1515
      %v1519 = vpop.permute.xlu0 %1518
      %v1523 = vcombine.high %v1513, %v1513
      %1524 = vrot.lane.b32.xlu0 %v1513, 15
      %v1525 = vpop.permute.xlu0 %1524
      %1526 = vrot.lane.b32.xlu0 %v1523, 15
      %v1527 = vpop.permute.xlu0 %1526
      %1528 = vrot.lane.b32.xlu0 %v1514, 15
      %v1529 = vpop.permute.xlu0 %1528
      %v1530 = vsel %vm388, %v1525, %v1527
      %v1531 = vsel %vm388, %v1527, %v1529
      %v1534 = vmul.f32 %v1519, %v1530
      %v1535 = vmul.f32 %v1519, %v1531
      %v1536 = vadd.f32 %v1461, %v1534
      %v1537 = vadd.f32 %v1462, %v1535
      %v1538 = vld [vmem:[%s265] sm:$0xff]
      %v1539 = vld [vmem:[%s265 + $0x8] sm:$0xf]
      %v1540 = vld [vmem:[%s2] sm:$0xf]
      %1542 = vset.pattern.permute.xlu0 12
      %1543 = vperm.xlu0 %1542, %v1540
      %v1544 = vpop.permute.xlu0 %1543
      %v1548 = vcombine.high %v1538, %v1538
      %1549 = vrot.lane.b32.xlu0 %v1538, 1
      %v1550 = vpop.permute.xlu0 %1549
      %1551 = vrot.lane.b32.xlu0 %v1548, 1
      %v1552 = vpop.permute.xlu0 %1551
      %1553 = vrot.lane.b32.xlu0 %v1539, 1
      %v1554 = vpop.permute.xlu0 %1553
      %v1555 = vsel %vm414, %v1550, %v1552
      %v1556 = vsel %vm414, %v1552, %v1554
      %v1559 = vmul.f32 %v1544, %v1555
      %v1560 = vmul.f32 %v1544, %v1556
      %v1561 = vadd.f32 %v1486, %v1559
      %v1562 = vadd.f32 %v1487, %v1560
      %v1563 = vld [vmem:[%s265 + $0x4] sm:$0xff]
      %v1564 = vld [vmem:[%s2] sm:$0xf]
      %1566 = vset.pattern.permute.xlu0 13
      %1567 = vperm.xlu0 %1566, %v1564
      %v1568 = vpop.permute.xlu0 %1567
      %v1571 = vcombine.high %v1563, %v1563
      %v1573 = vmul.f32 %v1568, %v1563
      %v1574 = vmul.f32 %v1568, %v1571
      %v1575 = vadd.f32 %v1511, %v1573
      %v1576 = vadd.f32 %v1512, %v1574
      %v1577 = vld [vmem:[%s265 + $0x4] sm:$0xff]
      %v1578 = vld [vmem:[%s265 + $0xc] sm:$0xf]
      %v1579 = vld [vmem:[%s2] sm:$0xf]
      %1581 = vset.pattern.permute.xlu0 14
      %1582 = vperm.xlu0 %1581, %v1579
      %v1583 = vpop.permute.xlu0 %1582
      %v1587 = vcombine.high %v1577, %v1577
      %1588 = vrot.lane.b32.xlu0 %v1577, 127
      %v1589 = vpop.permute.xlu0 %1588
      %1590 = vrot.lane.b32.xlu0 %v1587, 127
      %v1591 = vpop.permute.xlu0 %1590
      %1592 = vrot.lane.b32.xlu0 %v1578, 127
      %v1593 = vpop.permute.xlu0 %1592
      %v1594 = vsel %vm454, %v1589, %v1591
      %v1595 = vsel %vm454, %v1591, %v1593
      %v1598 = vmul.f32 %v1583, %v1594
      %v1599 = vmul.f32 %v1583, %v1595
      %v1600 = vadd.f32 %v1536, %v1598
      %v1601 = vadd.f32 %v1537, %v1599
      %v1602 = vld [vmem:[%s265 + $0x4] sm:$0xff]
      %v1603 = vld [vmem:[%s265 + $0xc] sm:$0xf]
      %v1604 = vld [vmem:[%s2] sm:$0xf]
      %1606 = vset.pattern.permute.xlu0 15
      %1607 = vperm.xlu0 %1606, %v1604
      %v1608 = vpop.permute.xlu0 %1607
      %v1612 = vcombine.high %v1602, %v1602
      %1613 = vrot.lane.b32.xlu0 %v1602, 113
      %v1614 = vpop.permute.xlu0 %1613
      %1615 = vrot.lane.b32.xlu0 %v1612, 113
      %v1616 = vpop.permute.xlu0 %1615
      %1617 = vrot.lane.b32.xlu0 %v1603, 113
      %v1618 = vpop.permute.xlu0 %1617
      %v1619 = vsel %vm480, %v1614, %v1616
      %v1620 = vsel %vm480, %v1616, %v1618
      %v1623 = vmul.f32 %v1608, %v1619
      %v1624 = vmul.f32 %v1608, %v1620
      %v1625 = vadd.f32 %v1561, %v1623
      %v1626 = vadd.f32 %v1562, %v1624
      %v1627 = vld [vmem:[%s265 + $0x4] sm:$0xff]
      %v1628 = vld [vmem:[%s265 + $0xc] sm:$0xf]
      %v1629 = vld [vmem:[%s2] sm:$0xf]
      %1631 = vset.pattern.permute.xlu0 16
      %1632 = vperm.xlu0 %1631, %v1629
      %v1633 = vpop.permute.xlu0 %1632
      %v1637 = vcombine.high %v1627, %v1627
      %1638 = vrot.lane.b32.xlu0 %v1627, 112
      %v1639 = vpop.permute.xlu0 %1638
      %1640 = vrot.lane.b32.xlu0 %v1637, 112
      %v1641 = vpop.permute.xlu0 %1640
      %1642 = vrot.lane.b32.xlu0 %v1628, 112
      %v1643 = vpop.permute.xlu0 %1642
      %v1644 = vsel %vm506, %v1639, %v1641
      %v1645 = vsel %vm506, %v1641, %v1643
      %v1648 = vmul.f32 %v1633, %v1644
      %v1649 = vmul.f32 %v1633, %v1645
      %v1650 = vadd.f32 %v1575, %v1648
      %v1651 = vadd.f32 %v1576, %v1649
      %v1652 = vld [vmem:[%s265 + $0x4] sm:$0xff]
      %v1653 = vld [vmem:[%s265 + $0xc] sm:$0xf]
      %v1654 = vld [vmem:[%s2] sm:$0xf]
      %1656 = vset.pattern.permute.xlu0 17
      %1657 = vperm.xlu0 %1656, %v1654
      %v1658 = vpop.permute.xlu0 %1657
      %v1662 = vcombine.high %v1652, %v1652
      %1663 = vrot.lane.b32.xlu0 %v1652, 111
      %v1664 = vpop.permute.xlu0 %1663
      %1665 = vrot.lane.b32.xlu0 %v1662, 111
      %v1666 = vpop.permute.xlu0 %1665
      %1667 = vrot.lane.b32.xlu0 %v1653, 111
      %v1668 = vpop.permute.xlu0 %1667
      %v1669 = vsel %vm532, %v1664, %v1666
      %v1670 = vsel %vm532, %v1666, %v1668
      %v1673 = vmul.f32 %v1658, %v1669
      %v1674 = vmul.f32 %v1658, %v1670
      %v1675 = vadd.f32 %v1600, %v1673
      %v1676 = vadd.f32 %v1601, %v1674
      %v1677 = vld [vmem:[%s289] sm:$0xff]
      %v1678 = vld [vmem:[%s289 + $0x8] sm:$0xf]
      %v1679 = vld [vmem:[%s2] sm:$0xf]
      %1681 = vset.pattern.permute.xlu0 18
      %1682 = vperm.xlu0 %1681, %v1679
      %v1683 = vpop.permute.xlu0 %1682
      %v1687 = vcombine.high %v1677, %v1677
      %1688 = vrot.lane.b32.xlu0 %v1677, 17
      %v1689 = vpop.permute.xlu0 %1688
      %1690 = vrot.lane.b32.xlu0 %v1687, 17
      %v1691 = vpop.permute.xlu0 %1690
      %1692 = vrot.lane.b32.xlu0 %v1678, 17
      %v1693 = vpop.permute.xlu0 %1692
      %v1694 = vsel %vm336, %v1689, %v1691
      %v1695 = vsel %vm336, %v1691, %v1693
      %v1698 = vmul.f32 %v1683, %v1694
      %v1699 = vmul.f32 %v1683, %v1695
      %v1700 = vadd.f32 %v1625, %v1698
      %v1701 = vadd.f32 %v1626, %v1699
      %v1702 = vld [vmem:[%s289] sm:$0xff]
      %v1703 = vld [vmem:[%s289 + $0x8] sm:$0xf]
      %v1704 = vld [vmem:[%s2] sm:$0xf]
      %1706 = vset.pattern.permute.xlu0 19
      %1707 = vperm.xlu0 %1706, %v1704
      %v1708 = vpop.permute.xlu0 %1707
      %v1712 = vcombine.high %v1702, %v1702
      %1713 = vrot.lane.b32.xlu0 %v1702, 16
      %v1714 = vpop.permute.xlu0 %1713
      %1715 = vrot.lane.b32.xlu0 %v1712, 16
      %v1716 = vpop.permute.xlu0 %1715
      %1717 = vrot.lane.b32.xlu0 %v1703, 16
      %v1718 = vpop.permute.xlu0 %1717
      %v1719 = vsel %vm362, %v1714, %v1716
      %v1720 = vsel %vm362, %v1716, %v1718
      %v1723 = vmul.f32 %v1708, %v1719
      %v1724 = vmul.f32 %v1708, %v1720
      %v1725 = vadd.f32 %v1650, %v1723
      %v1726 = vadd.f32 %v1651, %v1724
      %v1727 = vld [vmem:[%s289] sm:$0xff]
      %v1728 = vld [vmem:[%s289 + $0x8] sm:$0xf]
      %v1729 = vld [vmem:[%s2] sm:$0xf]
      %1731 = vset.pattern.permute.xlu0 20
      %1732 = vperm.xlu0 %1731, %v1729
      %v1733 = vpop.permute.xlu0 %1732
      %v1737 = vcombine.high %v1727, %v1727
      %1738 = vrot.lane.b32.xlu0 %v1727, 15
      %v1739 = vpop.permute.xlu0 %1738
      %1740 = vrot.lane.b32.xlu0 %v1737, 15
      %v1741 = vpop.permute.xlu0 %1740
      %1742 = vrot.lane.b32.xlu0 %v1728, 15
      %v1743 = vpop.permute.xlu0 %1742
      %v1744 = vsel %vm388, %v1739, %v1741
      %v1745 = vsel %vm388, %v1741, %v1743
      %v1748 = vmul.f32 %v1733, %v1744
      %v1749 = vmul.f32 %v1733, %v1745
      %v1750 = vadd.f32 %v1675, %v1748
      %v1751 = vadd.f32 %v1676, %v1749
      %v1752 = vld [vmem:[%s289] sm:$0xff]
      %v1753 = vld [vmem:[%s289 + $0x8] sm:$0xf]
      %v1754 = vld [vmem:[%s2] sm:$0xf]
      %1756 = vset.pattern.permute.xlu0 21
      %1757 = vperm.xlu0 %1756, %v1754
      %v1758 = vpop.permute.xlu0 %1757
      %v1762 = vcombine.high %v1752, %v1752
      %1763 = vrot.lane.b32.xlu0 %v1752, 1
      %v1764 = vpop.permute.xlu0 %1763
      %1765 = vrot.lane.b32.xlu0 %v1762, 1
      %v1766 = vpop.permute.xlu0 %1765
      %1767 = vrot.lane.b32.xlu0 %v1753, 1
      %v1768 = vpop.permute.xlu0 %1767
      %v1769 = vsel %vm414, %v1764, %v1766
      %v1770 = vsel %vm414, %v1766, %v1768
      %v1773 = vmul.f32 %v1758, %v1769
      %v1774 = vmul.f32 %v1758, %v1770
      %v1775 = vadd.f32 %v1700, %v1773
      %v1776 = vadd.f32 %v1701, %v1774
      %v1777 = vld [vmem:[%s289 + $0x4] sm:$0xff]
      %v1778 = vld [vmem:[%s2] sm:$0xf]
      %1780 = vset.pattern.permute.xlu0 22
      %1781 = vperm.xlu0 %1780, %v1778
      %v1782 = vpop.permute.xlu0 %1781
      %v1785 = vcombine.high %v1777, %v1777
      %v1787 = vmul.f32 %v1782, %v1777
      %v1788 = vmul.f32 %v1782, %v1785
      %v1789 = vadd.f32 %v1725, %v1787
      %v1790 = vadd.f32 %v1726, %v1788
      %v1791 = vld [vmem:[%s289 + $0x4] sm:$0xff]
      %v1792 = vld [vmem:[%s289 + $0xc] sm:$0xf]
      %v1793 = vld [vmem:[%s2] sm:$0xf]
      %1795 = vset.pattern.permute.xlu0 23
      %1796 = vperm.xlu0 %1795, %v1793
      %v1797 = vpop.permute.xlu0 %1796
      %v1801 = vcombine.high %v1791, %v1791
      %1802 = vrot.lane.b32.xlu0 %v1791, 127
      %v1803 = vpop.permute.xlu0 %1802
      %1804 = vrot.lane.b32.xlu0 %v1801, 127
      %v1805 = vpop.permute.xlu0 %1804
      %1806 = vrot.lane.b32.xlu0 %v1792, 127
      %v1807 = vpop.permute.xlu0 %1806
      %v1808 = vsel %vm454, %v1803, %v1805
      %v1809 = vsel %vm454, %v1805, %v1807
      %v1812 = vmul.f32 %v1797, %v1808
      %v1813 = vmul.f32 %v1797, %v1809
      %v1814 = vadd.f32 %v1750, %v1812
      %v1815 = vadd.f32 %v1751, %v1813
      %v1816 = vld [vmem:[%s289 + $0x4] sm:$0xff]
      %v1817 = vld [vmem:[%s289 + $0xc] sm:$0xf]
      %v1818 = vld [vmem:[%s2] sm:$0xf]
      %1820 = vset.pattern.permute.xlu0 24
      %1821 = vperm.xlu0 %1820, %v1818
      %v1822 = vpop.permute.xlu0 %1821
      %v1826 = vcombine.high %v1816, %v1816
      %1827 = vrot.lane.b32.xlu0 %v1816, 113
      %v1828 = vpop.permute.xlu0 %1827
      %1829 = vrot.lane.b32.xlu0 %v1826, 113
      %v1830 = vpop.permute.xlu0 %1829
      %1831 = vrot.lane.b32.xlu0 %v1817, 113
      %v1832 = vpop.permute.xlu0 %1831
      %v1833 = vsel %vm480, %v1828, %v1830
      %v1834 = vsel %vm480, %v1830, %v1832
      %v1837 = vmul.f32 %v1822, %v1833
      %v1838 = vmul.f32 %v1822, %v1834
      %v1839 = vadd.f32 %v1775, %v1837
      %v1840 = vadd.f32 %v1776, %v1838
      %v1841 = vld [vmem:[%s289 + $0x4] sm:$0xff]
      %v1842 = vld [vmem:[%s289 + $0xc] sm:$0xf]
      %v1843 = vld [vmem:[%s2] sm:$0xf]
      %1845 = vset.pattern.permute.xlu0 25
      %1846 = vperm.xlu0 %1845, %v1843
      %v1847 = vpop.permute.xlu0 %1846
      %v1851 = vcombine.high %v1841, %v1841
      %1852 = vrot.lane.b32.xlu0 %v1841, 112
      %v1853 = vpop.permute.xlu0 %1852
      %1854 = vrot.lane.b32.xlu0 %v1851, 112
      %v1855 = vpop.permute.xlu0 %1854
      %1856 = vrot.lane.b32.xlu0 %v1842, 112
      %v1857 = vpop.permute.xlu0 %1856
      %v1858 = vsel %vm506, %v1853, %v1855
      %v1859 = vsel %vm506, %v1855, %v1857
      %v1862 = vmul.f32 %v1847, %v1858
      %v1863 = vmul.f32 %v1847, %v1859
      %v1864 = vadd.f32 %v1789, %v1862
      %v1865 = vadd.f32 %v1790, %v1863
      %v1866 = vld [vmem:[%s289 + $0x4] sm:$0xff]
      %v1867 = vld [vmem:[%s289 + $0xc] sm:$0xf]
      %v1868 = vld [vmem:[%s2] sm:$0xf]
      %1870 = vset.pattern.permute.xlu0 26
      %1871 = vperm.xlu0 %1870, %v1868
      %v1872 = vpop.permute.xlu0 %1871
      %v1876 = vcombine.high %v1866, %v1866
      %1877 = vrot.lane.b32.xlu0 %v1866, 111
      %v1878 = vpop.permute.xlu0 %1877
      %1879 = vrot.lane.b32.xlu0 %v1876, 111
      %v1880 = vpop.permute.xlu0 %1879
      %1881 = vrot.lane.b32.xlu0 %v1867, 111
      %v1882 = vpop.permute.xlu0 %1881
      %v1883 = vsel %vm532, %v1878, %v1880
      %v1884 = vsel %vm532, %v1880, %v1882
      %v1887 = vmul.f32 %v1872, %v1883
      %v1888 = vmul.f32 %v1872, %v1884
      %v1889 = vadd.f32 %v1814, %v1887
      %v1890 = vadd.f32 %v1815, %v1888
      %v1891 = vld [vmem:[%s313] sm:$0xff]
      %v1892 = vld [vmem:[%s313 + $0x8] sm:$0xf]
      %v1893 = vld [vmem:[%s2] sm:$0xf]
      %1895 = vset.pattern.permute.xlu0 27
      %1896 = vperm.xlu0 %1895, %v1893
      %v1897 = vpop.permute.xlu0 %1896
      %v1901 = vcombine.high %v1891, %v1891
      %1902 = vrot.lane.b32.xlu0 %v1891, 17
      %v1903 = vpop.permute.xlu0 %1902
      %1904 = vrot.lane.b32.xlu0 %v1901, 17
      %v1905 = vpop.permute.xlu0 %1904
      %1906 = vrot.lane.b32.xlu0 %v1892, 17
      %v1907 = vpop.permute.xlu0 %1906
      %v1908 = vsel %vm336, %v1903, %v1905
      %v1909 = vsel %vm336, %v1905, %v1907
      %v1912 = vmul.f32 %v1897, %v1908
      %v1913 = vmul.f32 %v1897, %v1909
      %v1914 = vadd.f32 %v1839, %v1912
      %v1915 = vadd.f32 %v1840, %v1913
      %v1916 = vld [vmem:[%s313] sm:$0xff]
      %v1917 = vld [vmem:[%s313 + $0x8] sm:$0xf]
      %v1918 = vld [vmem:[%s2] sm:$0xf]
      %1920 = vset.pattern.permute.xlu0 28
      %1921 = vperm.xlu0 %1920, %v1918
      %v1922 = vpop.permute.xlu0 %1921
      %v1926 = vcombine.high %v1916, %v1916
      %1927 = vrot.lane.b32.xlu0 %v1916, 16
      %v1928 = vpop.permute.xlu0 %1927
      %1929 = vrot.lane.b32.xlu0 %v1926, 16
      %v1930 = vpop.permute.xlu0 %1929
      %1931 = vrot.lane.b32.xlu0 %v1917, 16
      %v1932 = vpop.permute.xlu0 %1931
      %v1933 = vsel %vm362, %v1928, %v1930
      %v1934 = vsel %vm362, %v1930, %v1932
      %v1937 = vmul.f32 %v1922, %v1933
      %v1938 = vmul.f32 %v1922, %v1934
      %v1939 = vadd.f32 %v1864, %v1937
      %v1940 = vadd.f32 %v1865, %v1938
      %v1941 = vld [vmem:[%s313] sm:$0xff]
      %v1942 = vld [vmem:[%s313 + $0x8] sm:$0xf]
      %v1943 = vld [vmem:[%s2] sm:$0xf]
      %1945 = vset.pattern.permute.xlu0 29
      %1946 = vperm.xlu0 %1945, %v1943
      %v1947 = vpop.permute.xlu0 %1946
      %v1951 = vcombine.high %v1941, %v1941
      %1952 = vrot.lane.b32.xlu0 %v1941, 15
      %v1953 = vpop.permute.xlu0 %1952
      %1954 = vrot.lane.b32.xlu0 %v1951, 15
      %v1955 = vpop.permute.xlu0 %1954
      %1956 = vrot.lane.b32.xlu0 %v1942, 15
      %v1957 = vpop.permute.xlu0 %1956
      %v1958 = vsel %vm388, %v1953, %v1955
      %v1959 = vsel %vm388, %v1955, %v1957
      %v1962 = vmul.f32 %v1947, %v1958
      %v1963 = vmul.f32 %v1947, %v1959
      %v1964 = vadd.f32 %v1889, %v1962
      %v1965 = vadd.f32 %v1890, %v1963
      %v1966 = vld [vmem:[%s313] sm:$0xff]
      %v1967 = vld [vmem:[%s313 + $0x8] sm:$0xf]
      %v1968 = vld [vmem:[%s2] sm:$0xf]
      %1970 = vset.pattern.permute.xlu0 30
      %1971 = vperm.xlu0 %1970, %v1968
      %v1972 = vpop.permute.xlu0 %1971
      %v1976 = vcombine.high %v1966, %v1966
      %1977 = vrot.lane.b32.xlu0 %v1966, 1
      %v1978 = vpop.permute.xlu0 %1977
      %1979 = vrot.lane.b32.xlu0 %v1976, 1
      %v1980 = vpop.permute.xlu0 %1979
      %1981 = vrot.lane.b32.xlu0 %v1967, 1
      %v1982 = vpop.permute.xlu0 %1981
      %v1983 = vsel %vm414, %v1978, %v1980
      %v1984 = vsel %vm414, %v1980, %v1982
      %v1987 = vmul.f32 %v1972, %v1983
      %v1988 = vmul.f32 %v1972, %v1984
      %v1989 = vadd.f32 %v1914, %v1987
      %v1990 = vadd.f32 %v1915, %v1988
      %v1991 = vld [vmem:[%s313 + $0x4] sm:$0xff]
      %v1992 = vld [vmem:[%s2] sm:$0xf]
      %1994 = vset.pattern.permute.xlu0 31
      %1995 = vperm.xlu0 %1994, %v1992
      %v1996 = vpop.permute.xlu0 %1995
      %v1999 = vcombine.high %v1991, %v1991
      %v2001 = vmul.f32 %v1996, %v1991
      %v2002 = vmul.f32 %v1996, %v1999
      %v2003 = vadd.f32 %v1939, %v2001
      %v2004 = vadd.f32 %v1940, %v2002
      %v2005 = vld [vmem:[%s313 + $0x4] sm:$0xff]
      %v2006 = vld [vmem:[%s313 + $0xc] sm:$0xf]
      %v2007 = vld [vmem:[%s2] sm:$0xf]
      %2009 = vset.pattern.permute.xlu0 32
      %2010 = vperm.xlu0 %2009, %v2007
      %v2011 = vpop.permute.xlu0 %2010
      %v2015 = vcombine.high %v2005, %v2005
      %2016 = vrot.lane.b32.xlu0 %v2005, 127
      %v2017 = vpop.permute.xlu0 %2016
      %2018 = vrot.lane.b32.xlu0 %v2015, 127
      %v2019 = vpop.permute.xlu0 %2018
      %2020 = vrot.lane.b32.xlu0 %v2006, 127
      %v2021 = vpop.permute.xlu0 %2020
      %v2022 = vsel %vm454, %v2017, %v2019
      %v2023 = vsel %vm454, %v2019, %v2021
      %v2026 = vmul.f32 %v2011, %v2022
      %v2027 = vmul.f32 %v2011, %v2023
      %v2028 = vadd.f32 %v1964, %v2026
      %v2029 = vadd.f32 %v1965, %v2027
      %v2030 = vld [vmem:[%s313 + $0x4] sm:$0xff]
      %v2031 = vld [vmem:[%s313 + $0xc] sm:$0xf]
      %v2032 = vld [vmem:[%s2] sm:$0xf]
      %2034 = vset.pattern.permute.xlu0 33
      %2035 = vperm.xlu0 %2034, %v2032
      %v2036 = vpop.permute.xlu0 %2035
      %v2040 = vcombine.high %v2030, %v2030
      %2041 = vrot.lane.b32.xlu0 %v2030, 113
      %v2042 = vpop.permute.xlu0 %2041
      %2043 = vrot.lane.b32.xlu0 %v2040, 113
      %v2044 = vpop.permute.xlu0 %2043
      %2045 = vrot.lane.b32.xlu0 %v2031, 113
      %v2046 = vpop.permute.xlu0 %2045
      %v2047 = vsel %vm480, %v2042, %v2044
      %v2048 = vsel %vm480, %v2044, %v2046
      %v2051 = vmul.f32 %v2036, %v2047
      %v2052 = vmul.f32 %v2036, %v2048
      %v2053 = vadd.f32 %v1989, %v2051
      %v2054 = vadd.f32 %v1990, %v2052
      %v2055 = vld [vmem:[%s313 + $0x4] sm:$0xff]
      %v2056 = vld [vmem:[%s313 + $0xc] sm:$0xf]
      %v2057 = vld [vmem:[%s2] sm:$0xf]
      %2059 = vset.pattern.permute.xlu0 34
      %2060 = vperm.xlu0 %2059, %v2057
      %v2061 = vpop.permute.xlu0 %2060
      %v2065 = vcombine.high %v2055, %v2055
      %2066 = vrot.lane.b32.xlu0 %v2055, 112
      %v2067 = vpop.permute.xlu0 %2066
      %2068 = vrot.lane.b32.xlu0 %v2065, 112
      %v2069 = vpop.permute.xlu0 %2068
      %2070 = vrot.lane.b32.xlu0 %v2056, 112
      %v2071 = vpop.permute.xlu0 %2070
      %v2072 = vsel %vm506, %v2067, %v2069
      %v2073 = vsel %vm506, %v2069, %v2071
      %v2076 = vmul.f32 %v2061, %v2072
      %v2077 = vmul.f32 %v2061, %v2073
      %v2078 = vadd.f32 %v2003, %v2076
      %v2079 = vadd.f32 %v2004, %v2077
      %v2080 = vld [vmem:[%s313 + $0x4] sm:$0xff]
      %v2081 = vld [vmem:[%s313 + $0xc] sm:$0xf]
      %v2082 = vld [vmem:[%s2] sm:$0xf]
      %2084 = vset.pattern.permute.xlu0 35
      %2085 = vperm.xlu0 %2084, %v2082
      %v2086 = vpop.permute.xlu0 %2085
      %v2090 = vcombine.high %v2080, %v2080
      %2091 = vrot.lane.b32.xlu0 %v2080, 111
      %v2092 = vpop.permute.xlu0 %2091
      %2093 = vrot.lane.b32.xlu0 %v2090, 111
      %v2094 = vpop.permute.xlu0 %2093
      %2095 = vrot.lane.b32.xlu0 %v2081, 111
      %v2096 = vpop.permute.xlu0 %2095
      %v2097 = vsel %vm532, %v2092, %v2094
      %v2098 = vsel %vm532, %v2094, %v2096
      %v2101 = vmul.f32 %v2086, %v2097
      %v2102 = vmul.f32 %v2086, %v2098
      %v2103 = vadd.f32 %v2028, %v2101
      %v2104 = vadd.f32 %v2029, %v2102
      %v2105 = vmul.f32 %v210, %v2053
      %v2106 = vmul.f32 %v211, %v2054
      %v2107 = vadd.f32 %v2078, %v2105
      %v2108 = vadd.f32 %v2079, %v2106
      %v2109 = vmul.f32 %v216, %v2103
      %v2110 = vmul.f32 %v217, %v2104
      %v2111 = vadd.f32 %v2107, %v2109
      %v2112 = vadd.f32 %v2108, %v2110
      %v2115 = vcombine.low %v2111, %v2112
      %v2117 = vadd.f32 %v218, %v2115
      %2118 = vst [vmem:[%s170] sm:$0xff] %v2117
      %p2119 = scmp.lt.s32.totalorder %s14, 1
      %s2120 = scalar_select %p2119, %s14, 1
      %s2121 = smul.addr %s2120, 2
      %s2122 = smul.addr %s2121, 4
      %s2123 = scalar_lea.vmem %s3, %s2122
      // Predicated region
      $region33: #{boundary_refine.1} parent=31 // pred_check
        %p2124 = pneg %p100
      $region34: #{boundary_refine.1} parent=31 // pred_check_branch
        %2126 = sbr.rel (%p2124) target = $region36
      $region35: #{boundary_refine.1} parent=31 // pred_region
        _
      $region36: #{boundary_refine.1} parent=31 // pred_fallthru
        _
    $region32: #{boundary_refine.1} parent=5 // pred_fallthru
      _
    %p2127 = scmp.le.s32.totalorder 2, %s9
    // Predicated region
    $region37: #{boundary_refine.1} parent=5 // pred_check
      %p2128 = pneg %p2127
    $region38: #{boundary_refine.1} parent=5 // pred_check_branch
      %2130 = sbr.rel (%p2128) target = $region40
    $region39: #{boundary_refine.1} parent=5 // pred_region
      %s2131 = ssub.s32 %s9, 2
      // Predicated region
      $region41: #{boundary_refine.1} parent=39 // pred_check
        %p2132 = pneg %p106
      $region42: #{boundary_refine.1} parent=39 // pred_check_branch
        %2134 = sbr.rel (%p2132) target = $region44
      $region43: #{boundary_refine.1} parent=39 // pred_region
        %p2135 = scmp.lt.s32.totalorder %s15, 1
        %s2136 = scalar_select %p2135, %s15, 1
        %s2137 = smul.addr %s2136, 2
        %s2138 = smul.addr %s2137, 4
        %s2139 = scalar_lea.vmem %s3, %s2138
      $region44: #{boundary_refine.1} parent=39 // pred_fallthru
        _
    $region40: #{boundary_refine.1} parent=5 // pred_fallthru
      _
  $region6: #{boundary_refine.1} parent=0 // loop_footer
    %s13 = sadd.s32 1, %s9
  $region7: #{boundary_refine.1} parent=0 // loop_footer_branch
    %8 = sbr.rel target = $region3
  $region8: #{boundary_refine.1} parent=0 // loop_exit
    _

</llo_original>
